<compile_context>
chip_gen: v6e
topology: v6e:2x2x1
jax: 0.10.0
libtpu: 0.0.40
codegen_flags: <defaults>
</compile_context>

<pallas_src>
import jax
import jax.numpy as jnp
from jax.experimental import pallas as pl
from jax.experimental.pallas import tpu as pltpu

_NEG_BIG = -1e30   # finite "-inf": conv pre-activations are O(1e3) at most,
                   # so masked entries can never win the max.


def _round_up(x, m):
    return (x + m - 1) // m * m


# --------------------------------------------------------------------------
# Kernel
# --------------------------------------------------------------------------
def _cnn_kernel(src_ref, tgt_ref,
                src_w_ref, src_b_ref, src_lw_ref, src_m_ref,
                tgt_w_ref, tgt_b_ref, tgt_lw_ref, tgt_m_ref,
                lin_b_ref, out_ref):
    """Fused conv hubs + max-over-time + Linear + sigmoid for one batch block.

    src_ref   : [Bb*L_src_pad, H]   activations (compute dtype, bf16 default)
    src_w_ref : [H, max_k*G]        tap-major packed conv weights
    src_b_ref : [1, G]      f32     conv bias (lanes ki*F..(ki+1)*F-1)
    src_lw_ref: [1, G]      f32     final-Linear weights for this hub
    src_m_ref : [L_pad, G]  f32     additive time-validity mask (0 / -1e30)
    (same layout for tgt), lin_b_ref: [1,1] f32, out_ref: [1, Bb, 1] f32.
    """
    Bb = out_ref.shape[1]

    def hub_logit(emb_ref, w_ref, b_ref, lw_ref, m_ref):
        L_pad, G = m_ref.shape
        R = emb_ref.shape[0]                 # Bb * L_pad
        max_k = w_ref.shape[1] // G
        # One lane-dense MXU matmul covering every tap of every kernel size.
        p = jnp.dot(emb_ref[...], w_ref[...],
                    preferred_element_type=jnp.float32)        # [R, max_k*G]
        # Tap sum: align tap j to its window start with an XLU sublane roll
        # (shift R-j == -j mod R); only 128-aligned lane slices are taken.
        s = p[:, 0:G]
        for j in range(1, max_k):
            s = s + pltpu.roll(p[:, j * G:(j + 1) * G], shift=R - j, axis=0)
        # Kill invalid window starts (incl. roll wrap-around / seq-pad rows)
        # with one additive mask, then a single full-width max over time.
        s = s.reshape(Bb, L_pad, G) + m_ref[...][None, :, :]
        mx = jnp.max(s, axis=1)                                # [Bb, G]
        # Fused bias + ReLU + final-Linear contribution (full lane width).
        # Exact: max_t relu(x_t + b) == relu(max_t x_t + b); pad lanes are
        # exactly 0 and carry zero bias / zero linear weight.
        f = jnp.maximum(mx + b_ref[...], 0.0)                  # [Bb, G]
        return jnp.sum(f * lw_ref[...], axis=-1, keepdims=True)  # [Bb, 1]

    logits = (hub_logit(src_ref, src_w_ref, src_b_ref, src_lw_ref, src_m_ref)
              + hub_logit(tgt_ref, tgt_w_ref, tgt_b_ref, tgt_lw_ref, tgt_m_ref)
              + lin_b_ref[...])
    out_ref[...] = jax.nn.sigmoid(logits).reshape(1, Bb, 1)


# --------------------------------------------------------------------------
# Packing / wrapper
# --------------------------------------------------------------------------
def _pack_hub(params, prefix, kernel_sizes, F, L, L_pad, lin_w_hub,
              compute_dtype):
    """Tap-major packing: tap j of every kernel size lives in lane group
    [j*G, (j+1)*G); inside a group, kernel size ki owns lanes [ki*F,(ki+1)*F).
    Returns (W [H, max_k*G], bias [1,G], lin_w [1,G], time-mask [L_pad,G])."""
    n_k = len(kernel_sizes)
    max_k = max(kernel_sizes)
    H = params[f'{prefix}_w{kernel_sizes[0]}'].shape[1]
    G = _round_up(n_k * F, 128)

    w_packed = jnp.zeros((H, max_k * G), jnp.float32)
    bias = jnp.zeros((1, G), jnp.float32)
    lin_w = jnp.zeros((1, G), jnp.float32)
    thresh = jnp.full((G,), L_pad, jnp.int32)     # pad lanes: always "valid"
    for ki, k in enumerate(kernel_sizes):
        w = params[f'{prefix}_w{k}']              # [k, H, F]
        for j in range(k):
            w_packed = w_packed.at[:, j * G + ki * F:
                                   j * G + (ki + 1) * F].set(w[j])
        bias = bias.at[0, ki * F:(ki + 1) * F].set(params[f'{prefix}_b{k}'][0])
        lin_w = lin_w.at[0, ki * F:(ki + 1) * F].set(
            lin_w_hub[ki * F:(ki + 1) * F])
        thresh = thresh.at[ki * F:(ki + 1) * F].set(L - k)   # valid: t <= L-k
    t = jnp.arange(L_pad, dtype=jnp.int32)[:, None]
    mask = jnp.where(t <= thresh[None, :], 0.0, _NEG_BIG).astype(jnp.float32)
    return w_packed.astype(compute_dtype), bias, lin_w, mask


def _pick_block_b(L_src_pad, L_tgt_pad, H, C_src, C_tgt, G_src, G_tgt,
                  act_itemsize, vmem_limit_bytes):
    # Per-sample VMEM: f32 matmul results + tap-sum temporaries, plus the
    # double-buffered activation input blocks.
    per_sample = (L_src_pad * (C_src + 2 * G_src)
                  + L_tgt_pad * (C_tgt + 2 * G_tgt)) * 4
    per_sample += 2 * (L_src_pad + L_tgt_pad) * H * act_itemsize
    resident = ((C_src + C_tgt) * H * act_itemsize
                + (L_src_pad * G_src + L_tgt_pad * G_tgt
                   + 2 * (G_src + G_tgt)) * 4)
    budget = max(2 << 20, vmem_limit_bytes // 2 - resident)
    bb = max(1, budget // per_sample)
    # Fill at least one 256-row MXU edge on M (>=128 suffices on v5e).
    bb = max(bb, pl.cdiv(256, min(L_src_pad, L_tgt_pad)))
    return int(min(bb, 1024))


def cnn_classifier_pallas(src_emb, tgt_emb, params, kernel_sizes, F,
                          block_b=None, compute_dtype=jnp.bfloat16,
                          vmem_limit_bytes=48 * 1024 * 1024):
    """scores[B] = sigmoid(Linear(concat(src_hub(src_emb), tgt_hub(tgt_emb)))).

    Notes: raise vmem_limit_bytes to 64-96 MiB on v5e/v6e (128 MiB physical)
    for even larger batch blocks; keep <=48 MiB on v7x (64 MiB physical).
    """
    B, L_src, H = src_emb.shape
    _, L_tgt, _ = tgt_emb.shape
    n_k = len(kernel_sizes)
    assert min(L_src, L_tgt) >= max(kernel_sizes)

    L_src_pad = _round_up(L_src, 8)
    L_tgt_pad = _round_up(L_tgt, 8)

    lin_w_col = params['lin_w'][:, 0]                     # [2*n_k*F]
    src_w, src_b, src_lw, src_mask = _pack_hub(
        params, 'src', kernel_sizes, F, L_src, L_src_pad,
        lin_w_col[:n_k * F], compute_dtype)
    tgt_w, tgt_b, tgt_lw, tgt_mask = _pack_hub(
        params, 'tgt', kernel_sizes, F, L_tgt, L_tgt_pad,
        lin_w_col[n_k * F:], compute_dtype)
    lin_b = params['lin_b'].astype(jnp.float32)           # [1, 1]

    G_src, G_tgt = src_b.shape[1], tgt_b.shape[1]
    C_src, C_tgt = src_w.shape[1], tgt_w.shape[1]
    act_itemsize = jnp.dtype(compute_dtype).itemsize

    if block_b is None:
        bb = _pick_block_b(L_src_pad, L_tgt_pad, H, C_src, C_tgt,
                           G_src, G_tgt, act_itemsize, vmem_limit_bytes)
        if B > bb:
            block_b = pl.cdiv(B, pl.cdiv(B, bb))   # <= bb, minimal batch pad
        elif B >= 16:
            block_b = pl.cdiv(B, 2)   # >=2 grid steps so both v7x TCs get work
        else:
            block_b = B
    block_b = max(1, int(block_b))

    # Pad B to a multiple of block_b (never collapse to a single huge block).
    B_pad = _round_up(B, block_b)
    nb = B_pad // block_b
    if B_pad != B:
        pad = B_pad - B
        src_emb = jnp.pad(src_emb, ((0, pad), (0, 0), (0, 0)))
        tgt_emb = jnp.pad(tgt_emb, ((0, pad), (0, 0), (0, 0)))

    # Pad seq lengths to sublane multiples; flatten to lane-dense [B*L, H].
    src_flat = jnp.pad(src_emb, ((0, 0), (0, L_src_pad - L_src), (0, 0))
                       ).reshape(B_pad * L_src_pad, H).astype(compute_dtype)
    tgt_flat = jnp.pad(tgt_emb, ((0, 0), (0, L_tgt_pad - L_tgt), (0, 0))
                       ).reshape(B_pad * L_tgt_pad, H).astype(compute_dtype)

    flops = 2 * B_pad * H * (L_src_pad * C_src + L_tgt_pad * C_tgt)
    bytes_accessed = sum(int(x.size) * x.dtype.itemsize for x in
                         (src_flat, tgt_flat, src_w, src_b, src_lw, src_mask,
                          tgt_w, tgt_b, tgt_lw, tgt_mask, lin_b)) + B_pad * 4

    def resident_spec(shape):   # grid-invariant: same block every step
        return pl.BlockSpec(shape, lambda i, _n=len(shape): (0,) * _n)

    out = pl.pallas_call(
        _cnn_kernel,
        out_shape=jax.ShapeDtypeStruct((nb, block_b, 1), jnp.float32),
        grid=(nb,),
        in_specs=[
            pl.BlockSpec((block_b * L_src_pad, H), lambda i: (i, 0)),
            pl.BlockSpec((block_b * L_tgt_pad, H), lambda i: (i, 0)),
            resident_spec(src_w.shape), resident_spec(src_b.shape),
            resident_spec(src_lw.shape), resident_spec(src_mask.shape),
            resident_spec(tgt_w.shape), resident_spec(tgt_b.shape),
            resident_spec(tgt_lw.shape), resident_spec(tgt_mask.shape),
            resident_spec(lin_b.shape),
        ],
        out_specs=pl.BlockSpec((1, block_b, 1), lambda i: (i, 0, 0)),
        compiler_params=pltpu.CompilerParams(
            dimension_semantics=("parallel",),
            vmem_limit_bytes=int(vmem_limit_bytes)),
        cost_estimate=pl.CostEstimate(
            flops=int(flops), transcendentals=int(B_pad),
            bytes_accessed=int(bytes_accessed)),
    )(src_flat, tgt_flat, src_w, src_b, src_lw, src_mask,
      tgt_w, tgt_b, tgt_lw, tgt_mask, lin_b)
    return out.reshape(B_pad)[:B]   # scores: [B]


# --------------------------------------------------------------------------
# Pure-JAX reference + synthetic init (mirrors the PyTorch module, eval mode)
# --------------------------------------------------------------------------
def reference_forward(src_emb, tgt_emb, params, kernel_sizes, F):
    def hub(emb, prefix, L):
        feats = []
        for k in kernel_sizes:
            w = params[f'{prefix}_w{k}']   # [k, H, F]
            b = params[f'{prefix}_b{k}']   # [1, F]
            outs = []
            for t in range(L - k + 1):
                window = emb[:, t:t + k, :]                      # [B, k, H]
                o = jnp.einsum('bkh,khf->bf', window, w) + b
                outs.append(jax.nn.relu(o))
            feats.append(jnp.max(jnp.stack(outs, 0), axis=0))    # max over time
        return jnp.concatenate(feats, axis=-1)

    s = hub(src_emb, 'src', src_emb.shape[1])
    t = hub(tgt_emb, 'tgt', tgt_emb.shape[1])
    st = jnp.concatenate([s, t], axis=-1)
    logits = st @ params['lin_w'] + params['lin_b']
    return jax.nn.sigmoid(logits)[:, 0]


def init_params(key, vocab_size, H, kernel_sizes, F, pad_id=0):
    """Synthetic init mirroring _init_weights: embedding ~U(-0.1,0.1) (pad row
    zeroed), conv/linear kaiming-uniform, biases zero."""
    params = {}
    keys = jax.random.split(key, 2 + 2 * len(kernel_sizes) + 1)
    ki = 0

    emb = jax.random.uniform(keys[ki], (vocab_size, H), jnp.float32, -0.1, 0.1)
    ki += 1
    emb = emb.at[pad_id].set(0.0)
    params['embedding'] = emb

    for prefix in ('src', 'tgt'):
        for k in kernel_sizes:
            fan_in = k * H   # Conv2d(1, F, (k, H)) fan_in = 1*k*H
            bound = (6.0 / fan_in) ** 0.5
            params[f'{prefix}_w{k}'] = jax.random.uniform(
                keys[ki], (k, H, F), jnp.float32, -bound, bound)
            ki += 1
            params[f'{prefix}_b{k}'] = jnp.zeros((1, F), jnp.float32)

    out_features = 2 * len(kernel_sizes) * F
    bound = (6.0 / out_features) ** 0.5
    params['lin_w'] = jax.random.uniform(
        keys[ki], (out_features, 1), jnp.float32, -bound, bound)
    params['lin_b'] = jnp.zeros((1, 1), jnp.float32)
    return params


if __name__ == "__main__":
    # Small, module-consistent shapes.
    B = 6
    vocab_size = 100
    H = 32            # hidden_size
    L_src = 16        # src_max_len
    L_tgt = 12        # tgt_max_len
    kernel_sizes = (1, 2, 3)   # Conv2dHub kernels 1..max_kernel_size
    F = 8             # filters per kernel size
    pad_id = 0

    key = jax.random.PRNGKey(0)
    k_params, k_src, k_tgt = jax.random.split(key, 3)
    params = init_params(k_params, vocab_size, H, kernel_sizes, F, pad_id)

    source_ids = jax.random.randint(k_src, (B, L_src), 1, vocab_size)
    target_ids = jax.random.randint(k_tgt, (B, L_tgt), 1, vocab_size)

    # Embedding lookup (gather) + dropout(eval)=identity: plain-JAX glue.
    # TODO(synk): embedding gather left outside the kernel (no win from a
    # Pallas gather at these sizes).
    src_emb = params['embedding'][source_ids]   # [B, L_src, H]
    tgt_emb = params['embedding'][target_ids]   # [B, L_tgt, H]

    ref = reference_forward(src_emb, tgt_emb, params, kernel_sizes, F)

    # 1) Exact f32 path, forced multi-step grid (B=6 -> pad to 8, nb=2):
    #    exercises batch padding, resident weights and 2-TC batch sharding.
    scores_f32 = jax.block_until_ready(
        cnn_classifier_pallas(src_emb, tgt_emb, params, kernel_sizes, F,
                              block_b=4, compute_dtype=jnp.float32))
    assert scores_f32.shape == (B,)
    assert jnp.allclose(scores_f32, ref, atol=1e-5, rtol=1e-5), (scores_f32, ref)

    # 2) Default fast path: bf16 MXU operands (f32 accumulation + f32 epilogue)
    #    with the heuristic block size; looser tolerance for bf16 operands.
    scores_bf16 = jax.block_until_ready(
        cnn_classifier_pallas(src_emb, tgt_emb, params, kernel_sizes, F))
    assert scores_bf16.shape == (B,)
    assert jnp.allclose(scores_bf16, ref, atol=5e-2, rtol=5e-2), (scores_bf16, ref)

    print("KERNEL_OK")
</pallas_src>

<mosaic_0001>
module attributes {stable_mosaic.version = 11 : i64} {
  func.func @_cnn_kernel(%arg0: i32, %arg1: memref<64x32xf32, #tpu.memory_space<vmem>>, %arg2: memref<64x32xf32, #tpu.memory_space<vmem>>, %arg3: memref<32x384xf32, #tpu.memory_space<vmem>>, %arg4: memref<1x128xf32, #tpu.memory_space<vmem>>, %arg5: memref<1x128xf32, #tpu.memory_space<vmem>>, %arg6: memref<16x128xf32, #tpu.memory_space<vmem>>, %arg7: memref<32x384xf32, #tpu.memory_space<vmem>>, %arg8: memref<1x128xf32, #tpu.memory_space<vmem>>, %arg9: memref<1x128xf32, #tpu.memory_space<vmem>>, %arg10: memref<16x128xf32, #tpu.memory_space<vmem>>, %arg11: memref<1x1xf32, #tpu.memory_space<vmem>>, %arg12: memref<1x4x1xf32, #tpu.memory_space<vmem>>) attributes {dimension_semantics = [#tpu.dimension_semantics<parallel>], iteration_bounds = array<i64: 2>, scalar_prefetch = 0 : i64, scratch_operands = 0 : i64, tpu.core_type = #tpu.core_type<tc>, window_params = [{transform_indices = @transform_0, window_bounds = array<i64: 64, 32>}, {transform_indices = @transform_1, window_bounds = array<i64: 64, 32>}, {pipeline_mode = #tpu.pipeline_mode<synchronous>, transform_indices = @transform_2, window_bounds = array<i64: 32, 384>}, {pipeline_mode = #tpu.pipeline_mode<synchronous>, transform_indices = @transform_3, window_bounds = array<i64: 1, 128>}, {pipeline_mode = #tpu.pipeline_mode<synchronous>, transform_indices = @transform_4, window_bounds = array<i64: 1, 128>}, {pipeline_mode = #tpu.pipeline_mode<synchronous>, transform_indices = @transform_5, window_bounds = array<i64: 16, 128>}, {pipeline_mode = #tpu.pipeline_mode<synchronous>, transform_indices = @transform_6, window_bounds = array<i64: 32, 384>}, {pipeline_mode = #tpu.pipeline_mode<synchronous>, transform_indices = @transform_7, window_bounds = array<i64: 1, 128>}, {pipeline_mode = #tpu.pipeline_mode<synchronous>, transform_indices = @transform_8, window_bounds = array<i64: 1, 128>}, {pipeline_mode = #tpu.pipeline_mode<synchronous>, transform_indices = @transform_9, window_bounds = array<i64: 16, 128>}, {pipeline_mode = #tpu.pipeline_mode<synchronous>, transform_indices = @transform_10, window_bounds = array<i64: 1, 1>}, {transform_indices = @transform_11, window_bounds = array<i64: 1, 4, 1>}]} {
    %c0 = arith.constant 0 : index
    %c0_0 = arith.constant 0 : index
    %0 = vector.load %arg1[%c0, %c0_0] : memref<64x32xf32, #tpu.memory_space<vmem>>, vector<64x32xf32>
    %c0_1 = arith.constant 0 : index
    %c0_2 = arith.constant 0 : index
    %1 = vector.load %arg3[%c0_1, %c0_2] : memref<32x384xf32, #tpu.memory_space<vmem>>, vector<32x384xf32>
    %cst = arith.constant dense<0.000000e+00> : vector<64x384xf32>
    %2 = tpu.matmul %0, %1, %cst {dimension_numbers = #tpu.dot_dimension_numbers<[1], [0], [0], [1], [0, 0, 1, 1], [], []>} : vector<64x32xf32>, vector<32x384xf32>, vector<64x384xf32> -> vector<64x384xf32>
    %3 = vector.extract_strided_slice %2 {offsets = [0, 0], sizes = [64, 128], strides = [1, 1]} : vector<64x384xf32> to vector<64x128xf32>
    %4 = vector.extract_strided_slice %2 {offsets = [0, 128], sizes = [64, 128], strides = [1, 1]} : vector<64x384xf32> to vector<64x128xf32>
    %c63_i32 = arith.constant 63 : i32
    %5 = tpu.dynamic_rotate %4 by %c63_i32 dim 0 : vector<64x128xf32>, i32 -> vector<64x128xf32>
    %6 = arith.addf %3, %5 : vector<64x128xf32>
    %7 = vector.extract_strided_slice %2 {offsets = [0, 256], sizes = [64, 128], strides = [1, 1]} : vector<64x384xf32> to vector<64x128xf32>
    %c62_i32 = arith.constant 62 : i32
    %8 = tpu.dynamic_rotate %7 by %c62_i32 dim 0 : vector<64x128xf32>, i32 -> vector<64x128xf32>
    %9 = arith.addf %6, %8 : vector<64x128xf32>
    %10 = vector.shape_cast %9 : vector<64x128xf32> to vector<4x16x128xf32>
    %c0_3 = arith.constant 0 : index
    %c0_4 = arith.constant 0 : index
    %11 = vector.load %arg6[%c0_3, %c0_4] : memref<16x128xf32, #tpu.memory_space<vmem>>, vector<16x128xf32>
    %12 = vector.shape_cast %11 : vector<16x128xf32> to vector<1x16x128xf32>
    %13 = vector.broadcast %12 : vector<1x16x128xf32> to vector<4x16x128xf32>
    %14 = arith.addf %10, %13 : vector<4x16x128xf32>
    %cst_5 = arith.constant dense<0xFF800000> : vector<4x128xf32>
    %15 = vector.multi_reduction <maximumf>, %14, %cst_5 [1] : vector<4x16x128xf32> to vector<4x128xf32>
    %c0_6 = arith.constant 0 : index
    %c0_7 = arith.constant 0 : index
    %16 = vector.load %arg4[%c0_6, %c0_7] : memref<1x128xf32, #tpu.memory_space<vmem>>, vector<1x128xf32>
    %17 = vector.broadcast %16 : vector<1x128xf32> to vector<4x128xf32>
    %18 = arith.addf %15, %17 : vector<4x128xf32>
    %cst_8 = arith.constant 0.000000e+00 : f32
    %19 = vector.broadcast %cst_8 : f32 to vector<4x128xf32>
    %20 = arith.maximumf %18, %19 : vector<4x128xf32>
    %c0_9 = arith.constant 0 : index
    %c0_10 = arith.constant 0 : index
    %21 = vector.load %arg5[%c0_9, %c0_10] : memref<1x128xf32, #tpu.memory_space<vmem>>, vector<1x128xf32>
    %22 = vector.broadcast %21 : vector<1x128xf32> to vector<4x128xf32>
    %23 = arith.mulf %20, %22 : vector<4x128xf32>
    %cst_11 = arith.constant dense<0.000000e+00> : vector<4xf32>
    %24 = vector.multi_reduction <add>, %23, %cst_11 [1] : vector<4x128xf32> to vector<4xf32>
    %25 = vector.shape_cast %24 : vector<4xf32> to vector<4x1xf32>
    %c0_12 = arith.constant 0 : index
    %c0_13 = arith.constant 0 : index
    %26 = vector.load %arg2[%c0_12, %c0_13] : memref<64x32xf32, #tpu.memory_space<vmem>>, vector<64x32xf32>
    %c0_14 = arith.constant 0 : index
    %c0_15 = arith.constant 0 : index
    %27 = vector.load %arg7[%c0_14, %c0_15] : memref<32x384xf32, #tpu.memory_space<vmem>>, vector<32x384xf32>
    %cst_16 = arith.constant dense<0.000000e+00> : vector<64x384xf32>
    %28 = tpu.matmul %26, %27, %cst_16 {dimension_numbers = #tpu.dot_dimension_numbers<[1], [0], [0], [1], [0, 0, 1, 1], [], []>} : vector<64x32xf32>, vector<32x384xf32>, vector<64x384xf32> -> vector<64x384xf32>
    %29 = vector.extract_strided_slice %28 {offsets = [0, 0], sizes = [64, 128], strides = [1, 1]} : vector<64x384xf32> to vector<64x128xf32>
    %30 = vector.extract_strided_slice %28 {offsets = [0, 128], sizes = [64, 128], strides = [1, 1]} : vector<64x384xf32> to vector<64x128xf32>
    %c63_i32_17 = arith.constant 63 : i32
    %31 = tpu.dynamic_rotate %30 by %c63_i32_17 dim 0 : vector<64x128xf32>, i32 -> vector<64x128xf32>
    %32 = arith.addf %29, %31 : vector<64x128xf32>
    %33 = vector.extract_strided_slice %28 {offsets = [0, 256], sizes = [64, 128], strides = [1, 1]} : vector<64x384xf32> to vector<64x128xf32>
    %c62_i32_18 = arith.constant 62 : i32
    %34 = tpu.dynamic_rotate %33 by %c62_i32_18 dim 0 : vector<64x128xf32>, i32 -> vector<64x128xf32>
    %35 = arith.addf %32, %34 : vector<64x128xf32>
    %36 = vector.shape_cast %35 : vector<64x128xf32> to vector<4x16x128xf32>
    %c0_19 = arith.constant 0 : index
    %c0_20 = arith.constant 0 : index
    %37 = vector.load %arg10[%c0_19, %c0_20] : memref<16x128xf32, #tpu.memory_space<vmem>>, vector<16x128xf32>
    %38 = vector.shape_cast %37 : vector<16x128xf32> to vector<1x16x128xf32>
    %39 = vector.broadcast %38 : vector<1x16x128xf32> to vector<4x16x128xf32>
    %40 = arith.addf %36, %39 : vector<4x16x128xf32>
    %cst_21 = arith.constant dense<0xFF800000> : vector<4x128xf32>
    %41 = vector.multi_reduction <maximumf>, %40, %cst_21 [1] : vector<4x16x128xf32> to vector<4x128xf32>
    %c0_22 = arith.constant 0 : index
    %c0_23 = arith.constant 0 : index
    %42 = vector.load %arg8[%c0_22, %c0_23] : memref<1x128xf32, #tpu.memory_space<vmem>>, vector<1x128xf32>
    %43 = vector.broadcast %42 : vector<1x128xf32> to vector<4x128xf32>
    %44 = arith.addf %41, %43 : vector<4x128xf32>
    %cst_24 = arith.constant 0.000000e+00 : f32
    %45 = vector.broadcast %cst_24 : f32 to vector<4x128xf32>
    %46 = arith.maximumf %44, %45 : vector<4x128xf32>
    %c0_25 = arith.constant 0 : index
    %c0_26 = arith.constant 0 : index
    %47 = vector.load %arg9[%c0_25, %c0_26] : memref<1x128xf32, #tpu.memory_space<vmem>>, vector<1x128xf32>
    %48 = vector.broadcast %47 : vector<1x128xf32> to vector<4x128xf32>
    %49 = arith.mulf %46, %48 : vector<4x128xf32>
    %cst_27 = arith.constant dense<0.000000e+00> : vector<4xf32>
    %50 = vector.multi_reduction <add>, %49, %cst_27 [1] : vector<4x128xf32> to vector<4xf32>
    %51 = vector.shape_cast %50 : vector<4xf32> to vector<4x1xf32>
    %52 = arith.addf %25, %51 : vector<4x1xf32>
    %c0_28 = arith.constant 0 : index
    %c0_29 = arith.constant 0 : index
    %53 = vector.load %arg11[%c0_28, %c0_29] : memref<1x1xf32, #tpu.memory_space<vmem>>, vector<1x1xf32>
    %54 = vector.broadcast %53 : vector<1x1xf32> to vector<4x1xf32>
    %55 = arith.addf %52, %54 : vector<4x1xf32>
    %56 = arith.negf %55 : vector<4x1xf32>
    %57 = math.exp %56 : vector<4x1xf32>
    %cst_30 = arith.constant 1.000000e+00 : f32
    %58 = vector.broadcast %cst_30 : f32 to vector<4x1xf32>
    %59 = arith.addf %58, %57 : vector<4x1xf32>
    %60 = arith.divf %58, %59 : vector<4x1xf32>
    %61 = vector.shape_cast %60 : vector<4x1xf32> to vector<1x4x1xf32>
    %c0_31 = arith.constant 0 : index
    %c0_32 = arith.constant 0 : index
    %c0_33 = arith.constant 0 : index
    %62 = vector.load %arg12[%c0_31, %c0_32, %c0_33] : memref<1x4x1xf32, #tpu.memory_space<vmem>>, vector<1x4x1xf32>
    tpu.vector_store %arg12[%c0_31, %c0_32, %c0_33], %61 {strides = array<i32>} : memref<1x4x1xf32, #tpu.memory_space<vmem>>, vector<1x4x1xf32>,
    return
  }
  func.func @transform_0(%arg0: i32) -> (i32, i32) {
    %c0_i32 = arith.constant 0 : i32
    %c0_i32_0 = arith.constant 0 : i32
    return %arg0, %c0_i32 : i32, i32
  }
  func.func @transform_1(%arg0: i32) -> (i32, i32) {
    %c0_i32 = arith.constant 0 : i32
    %c0_i32_0 = arith.constant 0 : i32
    return %arg0, %c0_i32 : i32, i32
  }
  func.func @transform_2(%arg0: i32) -> (i32, i32) {
    %c0_i32 = arith.constant 0 : i32
    %c0_i32_0 = arith.constant 0 : i32
    %c0_i32_1 = arith.constant 0 : i32
    return %c0_i32, %c0_i32_0 : i32, i32
  }
  func.func @transform_3(%arg0: i32) -> (i32, i32) {
    %c0_i32 = arith.constant 0 : i32
    %c0_i32_0 = arith.constant 0 : i32
    %c0_i32_1 = arith.constant 0 : i32
    return %c0_i32, %c0_i32_0 : i32, i32
  }
  func.func @transform_4(%arg0: i32) -> (i32, i32) {
    %c0_i32 = arith.constant 0 : i32
    %c0_i32_0 = arith.constant 0 : i32
    %c0_i32_1 = arith.constant 0 : i32
    return %c0_i32, %c0_i32_0 : i32, i32
  }
  func.func @transform_5(%arg0: i32) -> (i32, i32) {
    %c0_i32 = arith.constant 0 : i32
    %c0_i32_0 = arith.constant 0 : i32
    %c0_i32_1 = arith.constant 0 : i32
    return %c0_i32, %c0_i32_0 : i32, i32
  }
  func.func @transform_6(%arg0: i32) -> (i32, i32) {
    %c0_i32 = arith.constant 0 : i32
    %c0_i32_0 = arith.constant 0 : i32
    %c0_i32_1 = arith.constant 0 : i32
    return %c0_i32, %c0_i32_0 : i32, i32
  }
  func.func @transform_7(%arg0: i32) -> (i32, i32) {
    %c0_i32 = arith.constant 0 : i32
    %c0_i32_0 = arith.constant 0 : i32
    %c0_i32_1 = arith.constant 0 : i32
    return %c0_i32, %c0_i32_0 : i32, i32
  }
  func.func @transform_8(%arg0: i32) -> (i32, i32) {
    %c0_i32 = arith.constant 0 : i32
    %c0_i32_0 = arith.constant 0 : i32
    %c0_i32_1 = arith.constant 0 : i32
    return %c0_i32, %c0_i32_0 : i32, i32
  }
  func.func @transform_9(%arg0: i32) -> (i32, i32) {
    %c0_i32 = arith.constant 0 : i32
    %c0_i32_0 = arith.constant 0 : i32
    %c0_i32_1 = arith.constant 0 : i32
    return %c0_i32, %c0_i32_0 : i32, i32
  }
  func.func @transform_10(%arg0: i32) -> (i32, i32) {
    %c0_i32 = arith.constant 0 : i32
    %c0_i32_0 = arith.constant 0 : i32
    %c0_i32_1 = arith.constant 0 : i32
    return %c0_i32, %c0_i32_0 : i32, i32
  }
  func.func @transform_11(%arg0: i32) -> (i32, i32, i32) {
    %c0_i32 = arith.constant 0 : i32
    %c0_i32_0 = arith.constant 0 : i32
    %c0_i32_1 = arith.constant 0 : i32
    return %arg0, %c0_i32, %c0_i32_0 : i32, i32, i32
  }
}

</mosaic_0001>

<llo_original>
// kernel: tpu_custom_call.1
$region0: #{tpu_custom_call.1}
  #allocation0 [shape = 'u32[]', space=smem, size = 0x4, offset = 0x4, fixed_abs, tag = 'smem constant byte address 0x4 - core index']
  #allocation1 [shape = 'u32[144,128]{1,0:T(1,128)}', space=vmem, size = 0x12000, scoped, tag = 'internal scratch']
  #allocation2 [shape = 'f32[1,1]{1,0:T(1,128)S(1)}', space=vmem, size = 0x200, scoped, tag = 'scoped memory for tpu_custom_call.1']
  %s0 = inlined_call_operand.vmem [shape: f32[128,32], index: 0, kind: input, shape index: {}]
  %s1 = inlined_call_operand.vmem [shape: f32[128,32], index: 1, kind: input, shape index: {}]
  %s2 = inlined_call_operand.vmem [shape: f32[32,384], index: 2, kind: input, shape index: {}]
  %s3 = inlined_call_operand.vmem [shape: f32[1,128], index: 3, kind: input, shape index: {}]
  %s4 = inlined_call_operand.vmem [shape: f32[1,128], index: 4, kind: input, shape index: {}]
  %s5 = inlined_call_operand.vmem [shape: f32[16,128], index: 5, kind: input, shape index: {}]
  %s6 = inlined_call_operand.vmem [shape: f32[32,384], index: 6, kind: input, shape index: {}]
  %s7 = inlined_call_operand.vmem [shape: f32[1,128], index: 7, kind: input, shape index: {}]
  %s8 = inlined_call_operand.vmem [shape: f32[1,128], index: 8, kind: input, shape index: {}]
  %s9 = inlined_call_operand.vmem [shape: f32[16,128], index: 9, kind: input, shape index: {}]
  %s10 = inlined_call_operand.<no memory space> [shape: f32[1,1], index: 10, kind: input, shape index: {}]
  %s11 = inlined_call_operand.vmem [shape: f32[2,4,1], index: 11, kind: output, shape index: {}]
  %s12 = sld [smem:[#allocation0]]
  $region77: #{tpu_custom_call.1} parent=0
    _
  %s14 = ssub.s32 1, %s12
  %s15 = scalar_select 0, %s14, %s12
  %v16 = vstv %s10
  %17 = vst [vmem:[#allocation2] sm:$0x1] %v16
  loop: start=0, step=1, limit=4
  $region2: #{tpu_custom_call.1} parent=0 // loop_pre_header
    _
  $region3: #{tpu_custom_call.1} parent=0 // loop_header
    %s19 = sphi 0, %s23
    %p20 = scmp.ge.s32.totalorder %s19, 4
    %s29 = sphi 0, %s31
    %s32 = sphi 0, %s29
    %s33 = sphi 0, %s32
    %s49 = sphi 0, %s33
    %s55 = sphi 0, %s57
    %s58 = sphi 0, %s55
    %s59 = sphi 0, %s58
    %s75 = sphi 0, %s59
    %s79 = sphi 0, %s79
    %s81 = sphi 0, %s79
    %s82 = sphi 0, %s81
    %s96 = sphi 0, %s82
    %s100 = sphi 0, %s100
    %s102 = sphi 0, %s100
    %s103 = sphi 0, %s102
    %s117 = sphi 0, %s103
    %s121 = sphi 0, %s121
    %s123 = sphi 0, %s121
    %s124 = sphi 0, %s123
    %s138 = sphi 0, %s124
    %s142 = sphi 0, %s142
    %s144 = sphi 0, %s142
    %s145 = sphi 0, %s144
    %s159 = sphi 0, %s145
    %s163 = sphi 0, %s163
    %s165 = sphi 0, %s163
    %s166 = sphi 0, %s165
    %s180 = sphi 0, %s166
    %s184 = sphi 0, %s184
    %s186 = sphi 0, %s184
    %s187 = sphi 0, %s186
    %s201 = sphi 0, %s187
    %s205 = sphi 0, %s205
    %s207 = sphi 0, %s205
    %s208 = sphi 0, %s207
    %s222 = sphi 0, %s208
    %s226 = sphi 0, %s226
    %s228 = sphi 0, %s226
    %s229 = sphi 0, %s228
    %s243 = sphi 0, %s229
    %s247 = sphi 0, %s247
    %s249 = sphi 0, %s247
    %s250 = sphi 0, %s249
    %s264 = sphi 0, %s250
    %s270 = sphi 0, %s272
    %s273 = sphi 0, %s270
    %s274 = sphi 0, %s273
    %s290 = sphi 0, %s274
  $region4: #{tpu_custom_call.1} parent=0 // loop_header_branch
    %22 = sbr.rel (%p20) target = $region8
  $region5: #{tpu_custom_call.1} parent=0 // loop_body
    %s24 = ssub.s32 %s19, 1
    %s25 = ssub.s32 %s19, 2
    %s26 = sadd.s32 %s19, 1
    %s27 = ssub.s32 %s19, %s26
    %p28 = scmp.eq.s32.totalorder %s27, 0
    %s30 = sadd.s32 %s29, 1
    %s31 = scalar_select %p28, %s29, %s30
    %p34 = pneg %p28
    %p35 = scmp.eq.s32.totalorder %s19, 1
    %p36 = por %p34, %p35
    %p37 = scmp.ne.s32.totalorder %s29, %s32
    %p38 = scmp.eq.s32.totalorder %s19, 0
    %p39 = por %p37, %p38
    %p40 = scmp.ne.s32.totalorder %s29, %s32
    %p41 = scmp.eq.s32.totalorder %s24, 1
    %p42 = por %p40, %p41
    %p43 = scmp.ne.s32.totalorder %s32, %s33
    %p44 = scmp.eq.s32.totalorder %s24, 0
    %p45 = por %p43, %p44
    %p46 = scmp.ne.s32.totalorder %s32, %s33
    %p47 = scmp.eq.s32.totalorder %s25, 1
    %p48 = por %p46, %p47
    %p50 = scmp.ne.s32.totalorder %s33, %s49
    %p51 = scmp.eq.s32.totalorder %s25, 0
    %p52 = por %p50, %p51
    %s53 = ssub.s32 %s19, %s26
    %p54 = scmp.eq.s32.totalorder %s53, 0
    %s56 = sadd.s32 %s55, 1
    %s57 = scalar_select %p54, %s55, %s56
    %p60 = pneg %p54
    %p61 = scmp.eq.s32.totalorder %s19, 1
    %p62 = por %p60, %p61
    %p63 = scmp.ne.s32.totalorder %s55, %s58
    %p64 = scmp.eq.s32.totalorder %s19, 0
    %p65 = por %p63, %p64
    %p66 = scmp.ne.s32.totalorder %s55, %s58
    %p67 = scmp.eq.s32.totalorder %s24, 1
    %p68 = por %p66, %p67
    %p69 = scmp.ne.s32.totalorder %s58, %s59
    %p70 = scmp.eq.s32.totalorder %s24, 0
    %p71 = por %p69, %p70
    %p72 = scmp.ne.s32.totalorder %s58, %s59
    %p73 = scmp.eq.s32.totalorder %s25, 1
    %p74 = por %p72, %p73
    %p76 = scmp.ne.s32.totalorder %s59, %s75
    %p77 = scmp.eq.s32.totalorder %s25, 0
    %p78 = por %p76, %p77
    %s80 = sadd.s32 %s79, 1
    %p83 = scmp.eq.s32.totalorder %s19, 1
    %p84 = scmp.ne.s32.totalorder %s79, %s81
    %p85 = scmp.eq.s32.totalorder %s19, 0
    %p86 = por %p84, %p85
    %p87 = scmp.ne.s32.totalorder %s79, %s81
    %p88 = scmp.eq.s32.totalorder %s24, 1
    %p89 = por %p87, %p88
    %p90 = scmp.ne.s32.totalorder %s81, %s82
    %p91 = scmp.eq.s32.totalorder %s24, 0
    %p92 = por %p90, %p91
    %p93 = scmp.ne.s32.totalorder %s81, %s82
    %p94 = scmp.eq.s32.totalorder %s25, 1
    %p95 = por %p93, %p94
    %p97 = scmp.ne.s32.totalorder %s82, %s96
    %p98 = scmp.eq.s32.totalorder %s25, 0
    %p99 = por %p97, %p98
    %s101 = sadd.s32 %s100, 1
    %p104 = scmp.eq.s32.totalorder %s19, 1
    %p105 = scmp.ne.s32.totalorder %s100, %s102
    %p106 = scmp.eq.s32.totalorder %s19, 0
    %p107 = por %p105, %p106
    %p108 = scmp.ne.s32.totalorder %s100, %s102
    %p109 = scmp.eq.s32.totalorder %s24, 1
    %p110 = por %p108, %p109
    %p111 = scmp.ne.s32.totalorder %s102, %s103
    %p112 = scmp.eq.s32.totalorder %s24, 0
    %p113 = por %p111, %p112
    %p114 = scmp.ne.s32.totalorder %s102, %s103
    %p115 = scmp.eq.s32.totalorder %s25, 1
    %p116 = por %p114, %p115
    %p118 = scmp.ne.s32.totalorder %s103, %s117
    %p119 = scmp.eq.s32.totalorder %s25, 0
    %p120 = por %p118, %p119
    %s122 = sadd.s32 %s121, 1
    %p125 = scmp.eq.s32.totalorder %s19, 1
    %p126 = scmp.ne.s32.totalorder %s121, %s123
    %p127 = scmp.eq.s32.totalorder %s19, 0
    %p128 = por %p126, %p127
    %p129 = scmp.ne.s32.totalorder %s121, %s123
    %p130 = scmp.eq.s32.totalorder %s24, 1
    %p131 = por %p129, %p130
    %p132 = scmp.ne.s32.totalorder %s123, %s124
    %p133 = scmp.eq.s32.totalorder %s24, 0
    %p134 = por %p132, %p133
    %p135 = scmp.ne.s32.totalorder %s123, %s124
    %p136 = scmp.eq.s32.totalorder %s25, 1
    %p137 = por %p135, %p136
    %p139 = scmp.ne.s32.totalorder %s124, %s138
    %p140 = scmp.eq.s32.totalorder %s25, 0
    %p141 = por %p139, %p140
    %s143 = sadd.s32 %s142, 1
    %p146 = scmp.eq.s32.totalorder %s19, 1
    %p147 = scmp.ne.s32.totalorder %s142, %s144
    %p148 = scmp.eq.s32.totalorder %s19, 0
    %p149 = por %p147, %p148
    %p150 = scmp.ne.s32.totalorder %s142, %s144
    %p151 = scmp.eq.s32.totalorder %s24, 1
    %p152 = por %p150, %p151
    %p153 = scmp.ne.s32.totalorder %s144, %s145
    %p154 = scmp.eq.s32.totalorder %s24, 0
    %p155 = por %p153, %p154
    %p156 = scmp.ne.s32.totalorder %s144, %s145
    %p157 = scmp.eq.s32.totalorder %s25, 1
    %p158 = por %p156, %p157
    %p160 = scmp.ne.s32.totalorder %s145, %s159
    %p161 = scmp.eq.s32.totalorder %s25, 0
    %p162 = por %p160, %p161
    %s164 = sadd.s32 %s163, 1
    %p167 = scmp.eq.s32.totalorder %s19, 1
    %p168 = scmp.ne.s32.totalorder %s163, %s165
    %p169 = scmp.eq.s32.totalorder %s19, 0
    %p170 = por %p168, %p169
    %p171 = scmp.ne.s32.totalorder %s163, %s165
    %p172 = scmp.eq.s32.totalorder %s24, 1
    %p173 = por %p171, %p172
    %p174 = scmp.ne.s32.totalorder %s165, %s166
    %p175 = scmp.eq.s32.totalorder %s24, 0
    %p176 = por %p174, %p175
    %p177 = scmp.ne.s32.totalorder %s165, %s166
    %p178 = scmp.eq.s32.totalorder %s25, 1
    %p179 = por %p177, %p178
    %p181 = scmp.ne.s32.totalorder %s166, %s180
    %p182 = scmp.eq.s32.totalorder %s25, 0
    %p183 = por %p181, %p182
    %s185 = sadd.s32 %s184, 1
    %p188 = scmp.eq.s32.totalorder %s19, 1
    %p189 = scmp.ne.s32.totalorder %s184, %s186
    %p190 = scmp.eq.s32.totalorder %s19, 0
    %p191 = por %p189, %p190
    %p192 = scmp.ne.s32.totalorder %s184, %s186
    %p193 = scmp.eq.s32.totalorder %s24, 1
    %p194 = por %p192, %p193
    %p195 = scmp.ne.s32.totalorder %s186, %s187
    %p196 = scmp.eq.s32.totalorder %s24, 0
    %p197 = por %p195, %p196
    %p198 = scmp.ne.s32.totalorder %s186, %s187
    %p199 = scmp.eq.s32.totalorder %s25, 1
    %p200 = por %p198, %p199
    %p202 = scmp.ne.s32.totalorder %s187, %s201
    %p203 = scmp.eq.s32.totalorder %s25, 0
    %p204 = por %p202, %p203
    %s206 = sadd.s32 %s205, 1
    %p209 = scmp.eq.s32.totalorder %s19, 1
    %p210 = scmp.ne.s32.totalorder %s205, %s207
    %p211 = scmp.eq.s32.totalorder %s19, 0
    %p212 = por %p210, %p211
    %p213 = scmp.ne.s32.totalorder %s205, %s207
    %p214 = scmp.eq.s32.totalorder %s24, 1
    %p215 = por %p213, %p214
    %p216 = scmp.ne.s32.totalorder %s207, %s208
    %p217 = scmp.eq.s32.totalorder %s24, 0
    %p218 = por %p216, %p217
    %p219 = scmp.ne.s32.totalorder %s207, %s208
    %p220 = scmp.eq.s32.totalorder %s25, 1
    %p221 = por %p219, %p220
    %p223 = scmp.ne.s32.totalorder %s208, %s222
    %p224 = scmp.eq.s32.totalorder %s25, 0
    %p225 = por %p223, %p224
    %s227 = sadd.s32 %s226, 1
    %p230 = scmp.eq.s32.totalorder %s19, 1
    %p231 = scmp.ne.s32.totalorder %s226, %s228
    %p232 = scmp.eq.s32.totalorder %s19, 0
    %p233 = por %p231, %p232
    %p234 = scmp.ne.s32.totalorder %s226, %s228
    %p235 = scmp.eq.s32.totalorder %s24, 1
    %p236 = por %p234, %p235
    %p237 = scmp.ne.s32.totalorder %s228, %s229
    %p238 = scmp.eq.s32.totalorder %s24, 0
    %p239 = por %p237, %p238
    %p240 = scmp.ne.s32.totalorder %s228, %s229
    %p241 = scmp.eq.s32.totalorder %s25, 1
    %p242 = por %p240, %p241
    %p244 = scmp.ne.s32.totalorder %s229, %s243
    %p245 = scmp.eq.s32.totalorder %s25, 0
    %p246 = por %p244, %p245
    %s248 = sadd.s32 %s247, 1
    %p251 = scmp.eq.s32.totalorder %s19, 1
    %p252 = scmp.ne.s32.totalorder %s247, %s249
    %p253 = scmp.eq.s32.totalorder %s19, 0
    %p254 = por %p252, %p253
    %p255 = scmp.ne.s32.totalorder %s247, %s249
    %p256 = scmp.eq.s32.totalorder %s24, 1
    %p257 = por %p255, %p256
    %p258 = scmp.ne.s32.totalorder %s249, %s250
    %p259 = scmp.eq.s32.totalorder %s24, 0
    %p260 = por %p258, %p259
    %p261 = scmp.ne.s32.totalorder %s249, %s250
    %p262 = scmp.eq.s32.totalorder %s25, 1
    %p263 = por %p261, %p262
    %p265 = scmp.ne.s32.totalorder %s250, %s264
    %p266 = scmp.eq.s32.totalorder %s25, 0
    %p267 = por %p265, %p266
    %s268 = ssub.s32 %s19, %s26
    %p269 = scmp.eq.s32.totalorder %s268, 0
    %s271 = sadd.s32 %s270, 1
    %s272 = scalar_select %p269, %s270, %s271
    %p275 = pneg %p269
    %p276 = scmp.eq.s32.totalorder %s19, 1
    %p277 = por %p275, %p276
    %p278 = scmp.ne.s32.totalorder %s270, %s273
    %p279 = scmp.eq.s32.totalorder %s19, 0
    %p280 = por %p278, %p279
    %p281 = scmp.ne.s32.totalorder %s270, %s273
    %p282 = scmp.eq.s32.totalorder %s24, 1
    %p283 = por %p281, %p282
    %p284 = scmp.ne.s32.totalorder %s273, %s274
    %p285 = scmp.eq.s32.totalorder %s24, 0
    %p286 = por %p284, %p285
    %p287 = scmp.ne.s32.totalorder %s273, %s274
    %p288 = scmp.eq.s32.totalorder %s25, 1
    %p289 = por %p287, %p288
    %p291 = scmp.ne.s32.totalorder %s274, %s290
    %p292 = scmp.eq.s32.totalorder %s25, 0
    %p293 = por %p291, %p292
    %p294 = scmp.le.s32.totalorder 1, %s19
    %p295 = scmp.lt.s32.totalorder %s19, 3
    %p296 = pnand %p294, %p295
    %p297 = pneg %p296
    // Predicated region
    $region9: #{tpu_custom_call.1} parent=5 // pred_check
      _
    $region10: #{tpu_custom_call.1} parent=5 // pred_check_branch
      %299 = sbr.rel (%p296) target = $region12
    $region11: #{tpu_custom_call.1} parent=5 // pred_region
      %s300 = ssub.s32 %s19, 1
      // Predicated region
      $region13: #{tpu_custom_call.1} parent=11 // pred_check
        %p301 = pneg %p92
      $region14: #{tpu_custom_call.1} parent=11 // pred_check_branch
        %303 = sbr.rel (%p301) target = $region16
      $region15: #{tpu_custom_call.1} parent=11 // pred_region
        _
      $region16: #{tpu_custom_call.1} parent=11 // pred_fallthru
        _
      // Predicated region
      $region17: #{tpu_custom_call.1} parent=11 // pred_check
        %p304 = pneg %p113
      $region18: #{tpu_custom_call.1} parent=11 // pred_check_branch
        %306 = sbr.rel (%p304) target = $region20
      $region19: #{tpu_custom_call.1} parent=11 // pred_region
        _
      $region20: #{tpu_custom_call.1} parent=11 // pred_fallthru
        _
      // Predicated region
      $region21: #{tpu_custom_call.1} parent=11 // pred_check
        %p307 = pneg %p134
      $region22: #{tpu_custom_call.1} parent=11 // pred_check_branch
        %309 = sbr.rel (%p307) target = $region24
      $region23: #{tpu_custom_call.1} parent=11 // pred_region
        _
      $region24: #{tpu_custom_call.1} parent=11 // pred_fallthru
        _
      // Predicated region
      $region25: #{tpu_custom_call.1} parent=11 // pred_check
        %p310 = pneg %p155
      $region26: #{tpu_custom_call.1} parent=11 // pred_check_branch
        %312 = sbr.rel (%p310) target = $region28
      $region27: #{tpu_custom_call.1} parent=11 // pred_region
        _
      $region28: #{tpu_custom_call.1} parent=11 // pred_fallthru
        _
      // Predicated region
      $region29: #{tpu_custom_call.1} parent=11 // pred_check
        %p313 = pneg %p176
      $region30: #{tpu_custom_call.1} parent=11 // pred_check_branch
        %315 = sbr.rel (%p313) target = $region32
      $region31: #{tpu_custom_call.1} parent=11 // pred_region
        _
      $region32: #{tpu_custom_call.1} parent=11 // pred_fallthru
        _
      // Predicated region
      $region33: #{tpu_custom_call.1} parent=11 // pred_check
        %p316 = pneg %p197
      $region34: #{tpu_custom_call.1} parent=11 // pred_check_branch
        %318 = sbr.rel (%p316) target = $region36
      $region35: #{tpu_custom_call.1} parent=11 // pred_region
        _
      $region36: #{tpu_custom_call.1} parent=11 // pred_fallthru
        _
      // Predicated region
      $region37: #{tpu_custom_call.1} parent=11 // pred_check
        %p319 = pneg %p218
      $region38: #{tpu_custom_call.1} parent=11 // pred_check_branch
        %321 = sbr.rel (%p319) target = $region40
      $region39: #{tpu_custom_call.1} parent=11 // pred_region
        _
      $region40: #{tpu_custom_call.1} parent=11 // pred_fallthru
        _
      // Predicated region
      $region41: #{tpu_custom_call.1} parent=11 // pred_check
        %p322 = pneg %p239
      $region42: #{tpu_custom_call.1} parent=11 // pred_check_branch
        %324 = sbr.rel (%p322) target = $region44
      $region43: #{tpu_custom_call.1} parent=11 // pred_region
        _
      $region44: #{tpu_custom_call.1} parent=11 // pred_fallthru
        _
      // Predicated region
      $region45: #{tpu_custom_call.1} parent=11 // pred_check
        %p325 = pneg %p260
      $region46: #{tpu_custom_call.1} parent=11 // pred_check_branch
        %327 = sbr.rel (%p325) target = $region48
      $region47: #{tpu_custom_call.1} parent=11 // pred_region
        _
      $region48: #{tpu_custom_call.1} parent=11 // pred_fallthru
        _
    $region12: #{tpu_custom_call.1} parent=5 // pred_fallthru
      _
    %p328 = scmp.lt.s32.totalorder %s19, 2
    // Predicated region
    $region49: #{tpu_custom_call.1} parent=5 // pred_check
      %p329 = pneg %p328
    $region50: #{tpu_custom_call.1} parent=5 // pred_check_branch
      %331 = sbr.rel (%p329) target = $region52
    $region51: #{tpu_custom_call.1} parent=5 // pred_region
      // Predicated region
      $region53: #{tpu_custom_call.1} parent=51 // pred_check
        %p332 = pneg %p39
      $region54: #{tpu_custom_call.1} parent=51 // pred_check_branch
        %334 = sbr.rel (%p332) target = $region56
      $region55: #{tpu_custom_call.1} parent=51 // pred_region
        %s335 = smul.u32 8, %s19
        %p336 = scmp.lt.s32.totalorder %s335, 15
        %s337 = scalar_select %p336, %s335, 15
        %s338 = smul.addr %s337, 8
        %s339 = scalar_lea.vmem %s0, %s338
        %s340 = smul.u32 8, %s19
      $region56: #{tpu_custom_call.1} parent=51 // pred_fallthru
        _
      // Predicated region
      $region57: #{tpu_custom_call.1} parent=51 // pred_check
        %p341 = pneg %p65
      $region58: #{tpu_custom_call.1} parent=51 // pred_check_branch
        %343 = sbr.rel (%p341) target = $region60
      $region59: #{tpu_custom_call.1} parent=51 // pred_region
        %s344 = smul.u32 8, %s19
        %p345 = scmp.lt.s32.totalorder %s344, 15
        %s346 = scalar_select %p345, %s344, 15
        %s347 = smul.addr %s346, 8
        %s348 = scalar_lea.vmem %s1, %s347
        %s349 = smul.u32 8, %s19
      $region60: #{tpu_custom_call.1} parent=51 // pred_fallthru
        _
    $region52: #{tpu_custom_call.1} parent=5 // pred_fallthru
      _
    %p350 = scmp.le.s32.totalorder 1, %s19
    %p351 = scmp.lt.s32.totalorder %s19, 3
    %p352 = pnand %p350, %p351
    %p353 = pneg %p352
    // Predicated region
    $region61: #{tpu_custom_call.1} parent=5 // pred_check
      _
    $region62: #{tpu_custom_call.1} parent=5 // pred_check_branch
      %355 = sbr.rel (%p352) target = $region64
    $region63: #{tpu_custom_call.1} parent=5 // pred_region
      %s356 = ssub.s32 %s19, 1
      %s357 = smul.u32 8, %s24
      %p358 = scmp.lt.s32.totalorder %s357, 15
      %s359 = scalar_select %p358, %s357, 15
      %s360 = smul.addr %s359, 8
      %s361 = scalar_lea.vmem %s0, %s360
      %p362 = pneg %p45
      %p363 = pneg %p42
      %s364 = smul.u32 8, %s24
      %p365 = scmp.lt.s32.totalorder %s364, 15
      %s366 = scalar_select %p365, %s364, 15
      %s367 = smul.addr %s366, 8
      %s368 = scalar_lea.vmem %s1, %s367
      %p369 = pneg %p71
      %p370 = pneg %p68
      %p371 = pneg %p92
      %p372 = pneg %p89
      %p373 = pneg %p113
      %p374 = pneg %p110
      %p375 = pneg %p134
      %p376 = pneg %p131
      %p377 = pneg %p155
      %p378 = pneg %p152
      %p379 = pneg %p176
      %p380 = pneg %p173
      %p381 = pneg %p197
      %p382 = pneg %p194
      %p383 = pneg %p218
      %p384 = pneg %p215
      %p385 = pneg %p239
      %p386 = pneg %p236
      %p387 = pneg %p260
      %p388 = pneg %p257
      %p389 = pneg %p286
      %p390 = pneg %p283
      %p391 = scmp.lt.s32.totalorder %s24, 1
      %s392 = scalar_select %p391, %s24, 1
      %s393 = smul.addr %s392, 4
      %s394 = scalar_lea.vmem %s11, %s393
      %s395 = smul.u32 8, %s24
      %p396 = scmp.lt.s32.totalorder %s395, 15
      %s397 = scalar_select %p396, %s395, 15
      %s398 = smul.addr %s397, 8
      %s399 = scalar_lea.vmem %s0, %s398
      %s400 = smul.u32 8, %s24
      %s401 = smul.u32 8, %s24
      %p402 = scmp.lt.s32.totalorder %s401, 15
      %s403 = scalar_select %p402, %s401, 15
      %s404 = smul.addr %s403, 8
      %s405 = scalar_lea.vmem %s1, %s404
      %s406 = smul.u32 8, %s24
      %p407 = scmp.lt.s32.totalorder %s24, 1
      %s408 = scalar_select %p407, %s24, 1
      %s409 = smul.addr %s408, 4
      %s410 = scalar_lea.vmem %s11, %s409
      %v411 = vld [vmem:[%s399] sm:$0xff]
      %v412 = vld [vmem:[%s399 + $0x8] sm:$0xff]
      %v413 = vld [vmem:[%s399 + $0x10] sm:$0xff]
      %v414 = vld [vmem:[%s399 + $0x18] sm:$0xff]
      %v415 = vld [vmem:[%s399 + $0x20] sm:$0xff]
      %v416 = vld [vmem:[%s399 + $0x28] sm:$0xff]
      %v417 = vld [vmem:[%s399 + $0x30] sm:$0xff]
      %v418 = vld [vmem:[%s399 + $0x38] sm:$0xff]
      %v419 = vld [vmem:[%s2] sm:$0xff]
      %v420 = vld [vmem:[%s2 + $0x8] sm:$0xff]
      %v421 = vld [vmem:[%s2 + $0x10] sm:$0xff]
      %v422 = vld [vmem:[%s2 + $0x18] sm:$0xff]
      %v423 = vld [vmem:[%s2 + $0x20] sm:$0xff]
      %v424 = vld [vmem:[%s2 + $0x28] sm:$0xff]
      %v425 = vld [vmem:[%s2 + $0x30] sm:$0xff]
      %v426 = vld [vmem:[%s2 + $0x38] sm:$0xff]
      %v427 = vld [vmem:[%s2 + $0x40] sm:$0xff]
      %v428 = vld [vmem:[%s2 + $0x48] sm:$0xff]
      %v429 = vld [vmem:[%s2 + $0x50] sm:$0xff]
      %v430 = vld [vmem:[%s2 + $0x58] sm:$0xff]
      %vm431 = vcmask 261120
      %v433 = vsel %vm431, %v411, 0
      %v436 = vsel %vm431, %v412, 0
      %v439 = vsel %vm431, %v413, 0
      %v442 = vsel %vm431, %v414, 0
      %v445 = vsel %vm431, %v415, 0
      %v448 = vsel %vm431, %v416, 0
      %v451 = vsel %vm431, %v417, 0
      %v454 = vsel %vm431, %v418, 0
      %456 = vmatprep.subr.mxu0 0.0
      %457 = vmatpush1.msra.mxu0 0.0
      %458 = vmatprep.subr.mxu0 0.0
      %459 = vmatpush1.msra.mxu0 0.0
      %460 = vmatprep.subr.mxu0 0.0
      %461 = vmatpush1.msra.mxu0 0.0
      %462 = vmatprep.subr.mxu0 0.0
      %463 = vmatpush1.msra.mxu0 0.0
      %464 = vmatprep.subr.mxu0 0.0
      %465 = vmatpush1.msra.mxu0 0.0
      %466 = vmatprep.subr.mxu0 0.0
      %467 = vmatpush1.msra.mxu0 0.0
      %468 = vmatprep.subr.mxu0 0.0
      %469 = vmatpush1.msra.mxu0 0.0
      %470 = vmatprep.subr.mxu0 0.0
      %471 = vmatpush1.msra.mxu0 0.0
      %472 = vmatprep.subr.mxu0 0.0
      %473 = vmatpush1.msra.mxu0 0.0
      %474 = vmatprep.subr.mxu0 0.0
      %475 = vmatpush1.msra.mxu0 0.0
      %476 = vmatprep.subr.mxu0 0.0
      %477 = vmatpush1.msra.mxu0 0.0
      %478 = vmatprep.subr.mxu0 0.0
      %479 = vmatpush1.msra.mxu0 0.0
      %480 = vmatprep.subr.mxu0 %v429
      %481 = vmatpush1.msra.mxu0 %v428
      %482 = vmatprep.subr.mxu0 %v426
      %483 = vmatpush1.msra.mxu0 %v425
      %484 = vmatprep.subr.mxu0 %v423
      %485 = vmatpush1.msra.mxu0 %v422
      %486 = vmatprep.subr.mxu0 %v420
      %487 = vmatpush1.msra.mxu0 %v419
      %488 = vmatprep.subr.mxu0 0.0
      %489 = vmatpush2.msra.mxu0 0.0
      %490 = vmatprep.subr.mxu0 0.0
      %491 = vmatpush2.msra.mxu0 0.0
      %492 = vmatprep.subr.mxu0 0.0
      %493 = vmatpush2.msra.mxu0 0.0
      %494 = vmatprep.subr.mxu0 0.0
      %495 = vmatpush2.msra.mxu0 0.0
      %496 = vmatprep.subr.mxu0 0.0
      %497 = vmatpush2.msra.mxu0 0.0
      %498 = vmatprep.subr.mxu0 0.0
      %499 = vmatpush2.msra.mxu0 0.0
      %500 = vmatprep.subr.mxu0 0.0
      %501 = vmatpush2.msra.mxu0 0.0
      %502 = vmatprep.subr.mxu0 0.0
      %503 = vmatpush2.msra.mxu0 0.0
      %504 = vmatprep.subr.mxu0 0.0
      %505 = vmatpush2.msra.mxu0 0.0
      %506 = vmatprep.subr.mxu0 0.0
      %507 = vmatpush2.msra.mxu0 0.0
      %508 = vmatprep.subr.mxu0 0.0
      %509 = vmatpush2.msra.mxu0 0.0
      %510 = vmatprep.subr.mxu0 0.0
      %511 = vmatpush2.msra.mxu0 0.0
      %512 = vmatprep.subr.mxu0 0.0
      %513 = vmatpush2.msra.mxu0 0.0
      %514 = vmatprep.subr.mxu0 0.0
      %515 = vmatpush2.msra.mxu0 0.0
      %516 = vmatprep.subr.mxu0 0.0
      %517 = vmatpush2.msra.mxu0 0.0
      %518 = vmatprep.subr.mxu0 0.0
      %519 = vmatpush2.msra.mxu0 0.0
      %520 = vmatprep.mubr.f32.mxu0 0.0
      %521 = vmatmul.mubr.f32.gmra.mxu0 %v433
      %v522 = vpop.f32.mrf.mxu0
      %v523 = vadd.f32 0.0, %v522
      %v524 = vpop.f32.mrf.mxu0
      %v525 = vadd.f32 0.0, %v524
      %526 = vmatprep.mubr.f32.mxu0 0.0
      %527 = vmatmul.mubr.f32.gmra.mxu0 %v436
      %v528 = vpop.f32.mrf.mxu0
      %v529 = vadd.f32 0.0, %v528
      %v530 = vpop.f32.mrf.mxu0
      %v531 = vadd.f32 0.0, %v530
      %532 = vmatprep.mubr.f32.mxu0 0.0
      %533 = vmatmul.mubr.f32.gmra.mxu0 %v439
      %v534 = vpop.f32.mrf.mxu0
      %v535 = vadd.f32 0.0, %v534
      %v536 = vpop.f32.mrf.mxu0
      %v537 = vadd.f32 0.0, %v536
      %538 = vmatprep.mubr.f32.mxu0 0.0
      %539 = vmatmul.mubr.f32.gmra.mxu0 %v442
      %v540 = vpop.f32.mrf.mxu0
      %v541 = vadd.f32 0.0, %v540
      %v542 = vpop.f32.mrf.mxu0
      %v543 = vadd.f32 0.0, %v542
      %544 = vmatprep.mubr.f32.mxu0 0.0
      %545 = vmatmul.mubr.f32.gmra.mxu0 %v445
      %v546 = vpop.f32.mrf.mxu0
      %v547 = vadd.f32 0.0, %v546
      %v548 = vpop.f32.mrf.mxu0
      %v549 = vadd.f32 0.0, %v548
      %550 = vmatprep.mubr.f32.mxu0 0.0
      %551 = vmatmul.mubr.f32.gmra.mxu0 %v448
      %v552 = vpop.f32.mrf.mxu0
      %v553 = vadd.f32 0.0, %v552
      %v554 = vpop.f32.mrf.mxu0
      %v555 = vadd.f32 0.0, %v554
      %556 = vmatprep.mubr.f32.mxu0 0.0
      %557 = vmatmul.mubr.f32.gmra.mxu0 %v451
      %v558 = vpop.f32.mrf.mxu0
      %v559 = vadd.f32 0.0, %v558
      %v560 = vpop.f32.mrf.mxu0
      %v561 = vadd.f32 0.0, %v560
      %562 = vmatprep.mubr.f32.mxu0 0.0
      %563 = vmatmul.mubr.f32.gmra.mxu0 %v454
      %v564 = vpop.f32.mrf.mxu0
      %v565 = vadd.f32 0.0, %v564
      %v566 = vpop.f32.mrf.mxu0
      %v567 = vadd.f32 0.0, %v566
      %568 = vdwg.mxu0
      %569 = vmatprep.subr.mxu0 0.0
      %570 = vmatpush1.msra.mxu0 0.0
      %571 = vmatprep.subr.mxu0 0.0
      %572 = vmatpush1.msra.mxu0 0.0
      %573 = vmatprep.subr.mxu0 0.0
      %574 = vmatpush1.msra.mxu0 0.0
      %575 = vmatprep.subr.mxu0 0.0
      %576 = vmatpush1.msra.mxu0 0.0
      %577 = vmatprep.subr.mxu0 0.0
      %578 = vmatpush1.msra.mxu0 0.0
      %579 = vmatprep.subr.mxu0 0.0
      %580 = vmatpush1.msra.mxu0 0.0
      %581 = vmatprep.subr.mxu0 0.0
      %582 = vmatpush1.msra.mxu0 0.0
      %583 = vmatprep.subr.mxu0 0.0
      %584 = vmatpush1.msra.mxu0 0.0
      %585 = vmatprep.subr.mxu0 0.0
      %586 = vmatpush1.msra.mxu0 0.0
      %587 = vmatprep.subr.mxu0 0.0
      %588 = vmatpush1.msra.mxu0 0.0
      %589 = vmatprep.subr.mxu0 0.0
      %590 = vmatpush1.msra.mxu0 0.0
      %591 = vmatprep.subr.mxu0 0.0
      %592 = vmatpush1.msra.mxu0 0.0
      %593 = vmatprep.subr.mxu0 0.0
      %594 = vmatpush1.msra.mxu0 %v430
      %595 = vmatprep.subr.mxu0 0.0
      %596 = vmatpush1.msra.mxu0 %v427
      %597 = vmatprep.subr.mxu0 0.0
      %598 = vmatpush1.msra.mxu0 %v424
      %599 = vmatprep.subr.mxu0 0.0
      %600 = vmatpush1.msra.mxu0 %v421
      %601 = vmatprep.subr.mxu0 0.0
      %602 = vmatpush2.msra.mxu0 0.0
      %603 = vmatprep.subr.mxu0 0.0
      %604 = vmatpush2.msra.mxu0 0.0
      %605 = vmatprep.subr.mxu0 0.0
      %606 = vmatpush2.msra.mxu0 0.0
      %607 = vmatprep.subr.mxu0 0.0
      %608 = vmatpush2.msra.mxu0 0.0
      %609 = vmatprep.subr.mxu0 0.0
      %610 = vmatpush2.msra.mxu0 0.0
      %611 = vmatprep.subr.mxu0 0.0
      %612 = vmatpush2.msra.mxu0 0.0
      %613 = vmatprep.subr.mxu0 0.0
      %614 = vmatpush2.msra.mxu0 0.0
      %615 = vmatprep.subr.mxu0 0.0
      %616 = vmatpush2.msra.mxu0 0.0
      %617 = vmatprep.subr.mxu0 0.0
      %618 = vmatpush2.msra.mxu0 0.0
      %619 = vmatprep.subr.mxu0 0.0
      %620 = vmatpush2.msra.mxu0 0.0
      %621 = vmatprep.subr.mxu0 0.0
      %622 = vmatpush2.msra.mxu0 0.0
      %623 = vmatprep.subr.mxu0 0.0
      %624 = vmatpush2.msra.mxu0 0.0
      %625 = vmatprep.subr.mxu0 0.0
      %626 = vmatpush2.msra.mxu0 0.0
      %627 = vmatprep.subr.mxu0 0.0
      %628 = vmatpush2.msra.mxu0 0.0
      %629 = vmatprep.subr.mxu0 0.0
      %630 = vmatpush2.msra.mxu0 0.0
      %631 = vmatprep.subr.mxu0 0.0
      %632 = vmatpush2.msra.mxu0 0.0
      %633 = vmatprep.mubr.f32.mxu0 0.0
      %634 = vmatmul.mubr.f32.gmra.mxu0 %v433
      %v635 = vpop.f32.mrf.mxu0
      %v636 = vadd.f32 0.0, %v635
      %v637 = vpop.f32.mrf.mxu0
      %638 = vmatprep.mubr.f32.mxu0 0.0
      %639 = vmatmul.mubr.f32.gmra.mxu0 %v436
      %v640 = vpop.f32.mrf.mxu0
      %v641 = vadd.f32 0.0, %v640
      %v642 = vpop.f32.mrf.mxu0
      %643 = vmatprep.mubr.f32.mxu0 0.0
      %644 = vmatmul.mubr.f32.gmra.mxu0 %v439
      %v645 = vpop.f32.mrf.mxu0
      %v646 = vadd.f32 0.0, %v645
      %v647 = vpop.f32.mrf.mxu0
      %648 = vmatprep.mubr.f32.mxu0 0.0
      %649 = vmatmul.mubr.f32.gmra.mxu0 %v442
      %v650 = vpop.f32.mrf.mxu0
      %v651 = vadd.f32 0.0, %v650
      %v652 = vpop.f32.mrf.mxu0
      %653 = vmatprep.mubr.f32.mxu0 0.0
      %654 = vmatmul.mubr.f32.gmra.mxu0 %v445
      %v655 = vpop.f32.mrf.mxu0
      %v656 = vadd.f32 0.0, %v655
      %v657 = vpop.f32.mrf.mxu0
      %658 = vmatprep.mubr.f32.mxu0 0.0
      %659 = vmatmul.mubr.f32.gmra.mxu0 %v448
      %v660 = vpop.f32.mrf.mxu0
      %v661 = vadd.f32 0.0, %v660
      %v662 = vpop.f32.mrf.mxu0
      %663 = vmatprep.mubr.f32.mxu0 0.0
      %664 = vmatmul.mubr.f32.gmra.mxu0 %v451
      %v665 = vpop.f32.mrf.mxu0
      %v666 = vadd.f32 0.0, %v665
      %v667 = vpop.f32.mrf.mxu0
      %668 = vmatprep.mubr.f32.mxu0 0.0
      %669 = vmatmul.mubr.f32.gmra.mxu0 %v454
      %v670 = vpop.f32.mrf.mxu0
      %v671 = vadd.f32 0.0, %v670
      %v672 = vpop.f32.mrf.mxu0
      %673 = vdwg.mxu0
      %v674 = vrot.slane %v525, 1
      %v675 = vrot.slane %v531, 1
      %v676 = vrot.slane %v537, 1
      %v677 = vrot.slane %v543, 1
      %v678 = vrot.slane %v549, 1
      %v679 = vrot.slane %v555, 1
      %v680 = vrot.slane %v561, 1
      %v681 = vrot.slane %v567, 1
      %v682 = vlaneseq
      %v683 = vshrl.u32 %v682, 7
      %vm684 = vcmp.lt.s32.totalorder %v683, 7
      %v685 = vsel %vm684, %v680, %v681
      %v686 = vsel %vm684, %v679, %v680
      %v687 = vsel %vm684, %v678, %v679
      %v688 = vsel %vm684, %v677, %v678
      %v689 = vsel %vm684, %v676, %v677
      %v690 = vsel %vm684, %v675, %v676
      %v691 = vsel %vm684, %v674, %v675
      %v692 = vsel %vm684, %v681, %v674
      %v693 = vadd.f32 %v523, %v691
      %v694 = vadd.f32 %v529, %v690
      %v695 = vadd.f32 %v535, %v689
      %v696 = vadd.f32 %v541, %v688
      %v697 = vadd.f32 %v547, %v687
      %v698 = vadd.f32 %v553, %v686
      %v699 = vadd.f32 %v559, %v685
      %v700 = vadd.f32 %v565, %v692
      %v701 = vrot.slane %v636, 2
      %v702 = vrot.slane %v641, 2
      %v703 = vrot.slane %v646, 2
      %v704 = vrot.slane %v651, 2
      %v705 = vrot.slane %v656, 2
      %v706 = vrot.slane %v661, 2
      %v707 = vrot.slane %v666, 2
      %v708 = vrot.slane %v671, 2
      %vm709 = vcmp.lt.s32.totalorder %v683, 6
      %v710 = vsel %vm709, %v707, %v708
      %v711 = vsel %vm709, %v706, %v707
      %v712 = vsel %vm709, %v705, %v706
      %v713 = vsel %vm709, %v704, %v705
      %v714 = vsel %vm709, %v703, %v704
      %v715 = vsel %vm709, %v702, %v703
      %v716 = vsel %vm709, %v701, %v702
      %v717 = vsel %vm709, %v708, %v701
      %v718 = vadd.f32 %v693, %v716
      %v719 = vadd.f32 %v694, %v715
      %v720 = vadd.f32 %v695, %v714
      %v721 = vadd.f32 %v696, %v713
      %v722 = vadd.f32 %v697, %v712
      %v723 = vadd.f32 %v698, %v711
      %v724 = vadd.f32 %v699, %v710
      %v725 = vadd.f32 %v700, %v717
      %v726 = vld [vmem:[%s5] sm:$0xff]
      %v727 = vld [vmem:[%s5 + $0x8] sm:$0xff]
      %v728 = vadd.f32 %v718, %v726
      %v729 = vadd.f32 %v719, %v727
      %v730 = vadd.f32 %v720, %v726
      %v731 = vadd.f32 %v721, %v727
      %v732 = vadd.f32 %v722, %v726
      %v733 = vadd.f32 %v723, %v727
      %v734 = vadd.f32 %v724, %v726
      %v735 = vadd.f32 %v725, %v727
      %v736 = vmax.f32 %v728, %v729
      %v737 = vrot.slane %v736, 4
      %v738 = vmax.f32 %v736, %v737
      %v739 = vrot.slane %v738, 2
      %v740 = vmax.f32 %v738, %v739
      %v741 = vrot.slane %v740, 1
      %v742 = vmax.f32 %v740, %v741
      %v743 = vmax.f32 %v730, %v731
      %v744 = vrot.slane %v743, 4
      %v745 = vmax.f32 %v743, %v744
      %v746 = vrot.slane %v745, 2
      %v747 = vmax.f32 %v745, %v746
      %v748 = vrot.slane %v747, 1
      %v749 = vmax.f32 %v747, %v748
      %v750 = vmax.f32 %v732, %v733
      %v751 = vrot.slane %v750, 4
      %v752 = vmax.f32 %v750, %v751
      %v753 = vrot.slane %v752, 2
      %v754 = vmax.f32 %v752, %v753
      %v755 = vrot.slane %v754, 1
      %v756 = vmax.f32 %v754, %v755
      %v757 = vmax.f32 %v734, %v735
      %v758 = vrot.slane %v757, 4
      %v759 = vmax.f32 %v757, %v758
      %v760 = vrot.slane %v759, 2
      %v761 = vmax.f32 %v759, %v760
      %v762 = vrot.slane %v761, 1
      %v763 = vmax.f32 %v761, %v762
      %v764 = vld [vmem:[%s3] sm:$0x1]
      %v766 = vlaneseq
      %v767 = vshrl.u32 %v766, 7
      %v768 = vsub.s32 0, %v767
      %v769 = vrot.slane %v764, %v768
      %v771 = vadd.f32 %v742, %v769
      %v772 = vadd.f32 %v749, %v769
      %v773 = vadd.f32 %v756, %v769
      %v774 = vadd.f32 %v763, %v769
      %v775 = vmax.f32 %v771, 0.0
      %v776 = vmax.f32 %v772, 0.0
      %v777 = vmax.f32 %v773, 0.0
      %v778 = vmax.f32 %v774, 0.0
      %v779 = vld [vmem:[%s4] sm:$0x1]
      %v781 = vlaneseq
      %v782 = vshrl.u32 %v781, 7
      %v783 = vsub.s32 0, %v782
      %v784 = vrot.slane %v779, %v783
      %v786 = vmul.f32 %v775, %v784
      %v787 = vmul.f32 %v776, %v784
      %v788 = vmul.f32 %v777, %v784
      %v789 = vmul.f32 %v778, %v784
      %v794 = vrot.slane %v787, 7
      %vm795 = vcmask 1041409
      %v796 = vsel %vm795, %v794, %v786
      %v797 = vrot.slane %v788, 6
      %vm798 = vcmask 1042434
      %v799 = vsel %vm798, %v797, %v796
      %v800 = vrot.slane %v789, 5
      %vm801 = vcmask 1043459
      %v802 = vsel %vm801, %v800, %v799
      %vm804 = vcmask 1043456
      %v805 = vsel %vm804, %v802, 0.0
      %806 = vadd.xlane.f32.xlu0 %v805
      %v807 = vpop.xlane.xlu0 %806
      %v808 = vld [vmem:[%s405] sm:$0xff]
      %v809 = vld [vmem:[%s405 + $0x8] sm:$0xff]
      %v810 = vld [vmem:[%s405 + $0x10] sm:$0xff]
      %v811 = vld [vmem:[%s405 + $0x18] sm:$0xff]
      %v812 = vld [vmem:[%s405 + $0x20] sm:$0xff]
      %v813 = vld [vmem:[%s405 + $0x28] sm:$0xff]
      %v814 = vld [vmem:[%s405 + $0x30] sm:$0xff]
      %v815 = vld [vmem:[%s405 + $0x38] sm:$0xff]
      %v816 = vld [vmem:[%s6] sm:$0xff]
      %v817 = vld [vmem:[%s6 + $0x8] sm:$0xff]
      %v818 = vld [vmem:[%s6 + $0x10] sm:$0xff]
      %v819 = vld [vmem:[%s6 + $0x18] sm:$0xff]
      %v820 = vld [vmem:[%s6 + $0x20] sm:$0xff]
      %v821 = vld [vmem:[%s6 + $0x28] sm:$0xff]
      %v822 = vld [vmem:[%s6 + $0x30] sm:$0xff]
      %v823 = vld [vmem:[%s6 + $0x38] sm:$0xff]
      %v824 = vld [vmem:[%s6 + $0x40] sm:$0xff]
      %v825 = vld [vmem:[%s6 + $0x48] sm:$0xff]
      %v826 = vld [vmem:[%s6 + $0x50] sm:$0xff]
      %v827 = vld [vmem:[%s6 + $0x58] sm:$0xff]
      %v829 = vsel %vm431, %v808, 0
      %v832 = vsel %vm431, %v809, 0
      %v835 = vsel %vm431, %v810, 0
      %v838 = vsel %vm431, %v811, 0
      %v841 = vsel %vm431, %v812, 0
      %v844 = vsel %vm431, %v813, 0
      %v847 = vsel %vm431, %v814, 0
      %v850 = vsel %vm431, %v815, 0
      %852 = vmatprep.subr.mxu0 0.0
      %853 = vmatpush1.msra.mxu0 0.0
      %854 = vmatprep.subr.mxu0 0.0
      %855 = vmatpush1.msra.mxu0 0.0
      %856 = vmatprep.subr.mxu0 0.0
      %857 = vmatpush1.msra.mxu0 0.0
      %858 = vmatprep.subr.mxu0 0.0
      %859 = vmatpush1.msra.mxu0 0.0
      %860 = vmatprep.subr.mxu0 0.0
      %861 = vmatpush1.msra.mxu0 0.0
      %862 = vmatprep.subr.mxu0 0.0
      %863 = vmatpush1.msra.mxu0 0.0
      %864 = vmatprep.subr.mxu0 0.0
      %865 = vmatpush1.msra.mxu0 0.0
      %866 = vmatprep.subr.mxu0 0.0
      %867 = vmatpush1.msra.mxu0 0.0
      %868 = vmatprep.subr.mxu0 0.0
      %869 = vmatpush1.msra.mxu0 0.0
      %870 = vmatprep.subr.mxu0 0.0
      %871 = vmatpush1.msra.mxu0 0.0
      %872 = vmatprep.subr.mxu0 0.0
      %873 = vmatpush1.msra.mxu0 0.0
      %874 = vmatprep.subr.mxu0 0.0
      %875 = vmatpush1.msra.mxu0 0.0
      %876 = vmatprep.subr.mxu0 %v826
      %877 = vmatpush1.msra.mxu0 %v825
      %878 = vmatprep.subr.mxu0 %v823
      %879 = vmatpush1.msra.mxu0 %v822
      %880 = vmatprep.subr.mxu0 %v820
      %881 = vmatpush1.msra.mxu0 %v819
      %882 = vmatprep.subr.mxu0 %v817
      %883 = vmatpush1.msra.mxu0 %v816
      %884 = vmatprep.subr.mxu0 0.0
      %885 = vmatpush2.msra.mxu0 0.0
      %886 = vmatprep.subr.mxu0 0.0
      %887 = vmatpush2.msra.mxu0 0.0
      %888 = vmatprep.subr.mxu0 0.0
      %889 = vmatpush2.msra.mxu0 0.0
      %890 = vmatprep.subr.mxu0 0.0
      %891 = vmatpush2.msra.mxu0 0.0
      %892 = vmatprep.subr.mxu0 0.0
      %893 = vmatpush2.msra.mxu0 0.0
      %894 = vmatprep.subr.mxu0 0.0
      %895 = vmatpush2.msra.mxu0 0.0
      %896 = vmatprep.subr.mxu0 0.0
      %897 = vmatpush2.msra.mxu0 0.0
      %898 = vmatprep.subr.mxu0 0.0
      %899 = vmatpush2.msra.mxu0 0.0
      %900 = vmatprep.subr.mxu0 0.0
      %901 = vmatpush2.msra.mxu0 0.0
      %902 = vmatprep.subr.mxu0 0.0
      %903 = vmatpush2.msra.mxu0 0.0
      %904 = vmatprep.subr.mxu0 0.0
      %905 = vmatpush2.msra.mxu0 0.0
      %906 = vmatprep.subr.mxu0 0.0
      %907 = vmatpush2.msra.mxu0 0.0
      %908 = vmatprep.subr.mxu0 0.0
      %909 = vmatpush2.msra.mxu0 0.0
      %910 = vmatprep.subr.mxu0 0.0
      %911 = vmatpush2.msra.mxu0 0.0
      %912 = vmatprep.subr.mxu0 0.0
      %913 = vmatpush2.msra.mxu0 0.0
      %914 = vmatprep.subr.mxu0 0.0
      %915 = vmatpush2.msra.mxu0 0.0
      %916 = vmatprep.mubr.f32.mxu0 0.0
      %917 = vmatmul.mubr.f32.gmra.mxu0 %v829
      %v918 = vpop.f32.mrf.mxu0
      %v919 = vadd.f32 0.0, %v918
      %v920 = vpop.f32.mrf.mxu0
      %v921 = vadd.f32 0.0, %v920
      %922 = vmatprep.mubr.f32.mxu0 0.0
      %923 = vmatmul.mubr.f32.gmra.mxu0 %v832
      %v924 = vpop.f32.mrf.mxu0
      %v925 = vadd.f32 0.0, %v924
      %v926 = vpop.f32.mrf.mxu0
      %v927 = vadd.f32 0.0, %v926
      %928 = vmatprep.mubr.f32.mxu0 0.0
      %929 = vmatmul.mubr.f32.gmra.mxu0 %v835
      %v930 = vpop.f32.mrf.mxu0
      %v931 = vadd.f32 0.0, %v930
      %v932 = vpop.f32.mrf.mxu0
      %v933 = vadd.f32 0.0, %v932
      %934 = vmatprep.mubr.f32.mxu0 0.0
      %935 = vmatmul.mubr.f32.gmra.mxu0 %v838
      %v936 = vpop.f32.mrf.mxu0
      %v937 = vadd.f32 0.0, %v936
      %v938 = vpop.f32.mrf.mxu0
      %v939 = vadd.f32 0.0, %v938
      %940 = vmatprep.mubr.f32.mxu0 0.0
      %941 = vmatmul.mubr.f32.gmra.mxu0 %v841
      %v942 = vpop.f32.mrf.mxu0
      %v943 = vadd.f32 0.0, %v942
      %v944 = vpop.f32.mrf.mxu0
      %v945 = vadd.f32 0.0, %v944
      %946 = vmatprep.mubr.f32.mxu0 0.0
      %947 = vmatmul.mubr.f32.gmra.mxu0 %v844
      %v948 = vpop.f32.mrf.mxu0
      %v949 = vadd.f32 0.0, %v948
      %v950 = vpop.f32.mrf.mxu0
      %v951 = vadd.f32 0.0, %v950
      %952 = vmatprep.mubr.f32.mxu0 0.0
      %953 = vmatmul.mubr.f32.gmra.mxu0 %v847
      %v954 = vpop.f32.mrf.mxu0
      %v955 = vadd.f32 0.0, %v954
      %v956 = vpop.f32.mrf.mxu0
      %v957 = vadd.f32 0.0, %v956
      %958 = vmatprep.mubr.f32.mxu0 0.0
      %959 = vmatmul.mubr.f32.gmra.mxu0 %v850
      %v960 = vpop.f32.mrf.mxu0
      %v961 = vadd.f32 0.0, %v960
      %v962 = vpop.f32.mrf.mxu0
      %v963 = vadd.f32 0.0, %v962
      %964 = vdwg.mxu0
      %965 = vmatprep.subr.mxu0 0.0
      %966 = vmatpush1.msra.mxu0 0.0
      %967 = vmatprep.subr.mxu0 0.0
      %968 = vmatpush1.msra.mxu0 0.0
      %969 = vmatprep.subr.mxu0 0.0
      %970 = vmatpush1.msra.mxu0 0.0
      %971 = vmatprep.subr.mxu0 0.0
      %972 = vmatpush1.msra.mxu0 0.0
      %973 = vmatprep.subr.mxu0 0.0
      %974 = vmatpush1.msra.mxu0 0.0
      %975 = vmatprep.subr.mxu0 0.0
      %976 = vmatpush1.msra.mxu0 0.0
      %977 = vmatprep.subr.mxu0 0.0
      %978 = vmatpush1.msra.mxu0 0.0
      %979 = vmatprep.subr.mxu0 0.0
      %980 = vmatpush1.msra.mxu0 0.0
      %981 = vmatprep.subr.mxu0 0.0
      %982 = vmatpush1.msra.mxu0 0.0
      %983 = vmatprep.subr.mxu0 0.0
      %984 = vmatpush1.msra.mxu0 0.0
      %985 = vmatprep.subr.mxu0 0.0
      %986 = vmatpush1.msra.mxu0 0.0
      %987 = vmatprep.subr.mxu0 0.0
      %988 = vmatpush1.msra.mxu0 0.0
      %989 = vmatprep.subr.mxu0 0.0
      %990 = vmatpush1.msra.mxu0 %v827
      %991 = vmatprep.subr.mxu0 0.0
      %992 = vmatpush1.msra.mxu0 %v824
      %993 = vmatprep.subr.mxu0 0.0
      %994 = vmatpush1.msra.mxu0 %v821
      %995 = vmatprep.subr.mxu0 0.0
      %996 = vmatpush1.msra.mxu0 %v818
      %997 = vmatprep.subr.mxu0 0.0
      %998 = vmatpush2.msra.mxu0 0.0
      %999 = vmatprep.subr.mxu0 0.0
      %1000 = vmatpush2.msra.mxu0 0.0
      %1001 = vmatprep.subr.mxu0 0.0
      %1002 = vmatpush2.msra.mxu0 0.0
      %1003 = vmatprep.subr.mxu0 0.0
      %1004 = vmatpush2.msra.mxu0 0.0
      %1005 = vmatprep.subr.mxu0 0.0
      %1006 = vmatpush2.msra.mxu0 0.0
      %1007 = vmatprep.subr.mxu0 0.0
      %1008 = vmatpush2.msra.mxu0 0.0
      %1009 = vmatprep.subr.mxu0 0.0
      %1010 = vmatpush2.msra.mxu0 0.0
      %1011 = vmatprep.subr.mxu0 0.0
      %1012 = vmatpush2.msra.mxu0 0.0
      %1013 = vmatprep.subr.mxu0 0.0
      %1014 = vmatpush2.msra.mxu0 0.0
      %1015 = vmatprep.subr.mxu0 0.0
      %1016 = vmatpush2.msra.mxu0 0.0
      %1017 = vmatprep.subr.mxu0 0.0
      %1018 = vmatpush2.msra.mxu0 0.0
      %1019 = vmatprep.subr.mxu0 0.0
      %1020 = vmatpush2.msra.mxu0 0.0
      %1021 = vmatprep.subr.mxu0 0.0
      %1022 = vmatpush2.msra.mxu0 0.0
      %1023 = vmatprep.subr.mxu0 0.0
      %1024 = vmatpush2.msra.mxu0 0.0
      %1025 = vmatprep.subr.mxu0 0.0
      %1026 = vmatpush2.msra.mxu0 0.0
      %1027 = vmatprep.subr.mxu0 0.0
      %1028 = vmatpush2.msra.mxu0 0.0
      %1029 = vmatprep.mubr.f32.mxu0 0.0
      %1030 = vmatmul.mubr.f32.gmra.mxu0 %v829
      %v1031 = vpop.f32.mrf.mxu0
      %v1032 = vadd.f32 0.0, %v1031
      %v1033 = vpop.f32.mrf.mxu0
      %1034 = vmatprep.mubr.f32.mxu0 0.0
      %1035 = vmatmul.mubr.f32.gmra.mxu0 %v832
      %v1036 = vpop.f32.mrf.mxu0
      %v1037 = vadd.f32 0.0, %v1036
      %v1038 = vpop.f32.mrf.mxu0
      %1039 = vmatprep.mubr.f32.mxu0 0.0
      %1040 = vmatmul.mubr.f32.gmra.mxu0 %v835
      %v1041 = vpop.f32.mrf.mxu0
      %v1042 = vadd.f32 0.0, %v1041
      %v1043 = vpop.f32.mrf.mxu0
      %1044 = vmatprep.mubr.f32.mxu0 0.0
      %1045 = vmatmul.mubr.f32.gmra.mxu0 %v838
      %v1046 = vpop.f32.mrf.mxu0
      %v1047 = vadd.f32 0.0, %v1046
      %v1048 = vpop.f32.mrf.mxu0
      %1049 = vmatprep.mubr.f32.mxu0 0.0
      %1050 = vmatmul.mubr.f32.gmra.mxu0 %v841
      %v1051 = vpop.f32.mrf.mxu0
      %v1052 = vadd.f32 0.0, %v1051
      %v1053 = vpop.f32.mrf.mxu0
      %1054 = vmatprep.mubr.f32.mxu0 0.0
      %1055 = vmatmul.mubr.f32.gmra.mxu0 %v844
      %v1056 = vpop.f32.mrf.mxu0
      %v1057 = vadd.f32 0.0, %v1056
      %v1058 = vpop.f32.mrf.mxu0
      %1059 = vmatprep.mubr.f32.mxu0 0.0
      %1060 = vmatmul.mubr.f32.gmra.mxu0 %v847
      %v1061 = vpop.f32.mrf.mxu0
      %v1062 = vadd.f32 0.0, %v1061
      %v1063 = vpop.f32.mrf.mxu0
      %1064 = vmatprep.mubr.f32.mxu0 0.0
      %1065 = vmatmul.mubr.f32.gmra.mxu0 %v850
      %v1066 = vpop.f32.mrf.mxu0
      %v1067 = vadd.f32 0.0, %v1066
      %v1068 = vpop.f32.mrf.mxu0
      %1069 = vdwg.mxu0
      %v1070 = vrot.slane %v921, 1
      %v1071 = vrot.slane %v927, 1
      %v1072 = vrot.slane %v933, 1
      %v1073 = vrot.slane %v939, 1
      %v1074 = vrot.slane %v945, 1
      %v1075 = vrot.slane %v951, 1
      %v1076 = vrot.slane %v957, 1
      %v1077 = vrot.slane %v963, 1
      %v1078 = vsel %vm684, %v1076, %v1077
      %v1079 = vsel %vm684, %v1075, %v1076
      %v1080 = vsel %vm684, %v1074, %v1075
      %v1081 = vsel %vm684, %v1073, %v1074
      %v1082 = vsel %vm684, %v1072, %v1073
      %v1083 = vsel %vm684, %v1071, %v1072
      %v1084 = vsel %vm684, %v1070, %v1071
      %v1085 = vsel %vm684, %v1077, %v1070
      %v1086 = vadd.f32 %v919, %v1084
      %v1087 = vadd.f32 %v925, %v1083
      %v1088 = vadd.f32 %v931, %v1082
      %v1089 = vadd.f32 %v937, %v1081
      %v1090 = vadd.f32 %v943, %v1080
      %v1091 = vadd.f32 %v949, %v1079
      %v1092 = vadd.f32 %v955, %v1078
      %v1093 = vadd.f32 %v961, %v1085
      %v1094 = vrot.slane %v1032, 2
      %v1095 = vrot.slane %v1037, 2
      %v1096 = vrot.slane %v1042, 2
      %v1097 = vrot.slane %v1047, 2
      %v1098 = vrot.slane %v1052, 2
      %v1099 = vrot.slane %v1057, 2
      %v1100 = vrot.slane %v1062, 2
      %v1101 = vrot.slane %v1067, 2
      %v1102 = vsel %vm709, %v1100, %v1101
      %v1103 = vsel %vm709, %v1099, %v1100
      %v1104 = vsel %vm709, %v1098, %v1099
      %v1105 = vsel %vm709, %v1097, %v1098
      %v1106 = vsel %vm709, %v1096, %v1097
      %v1107 = vsel %vm709, %v1095, %v1096
      %v1108 = vsel %vm709, %v1094, %v1095
      %v1109 = vsel %vm709, %v1101, %v1094
      %v1110 = vadd.f32 %v1086, %v1108
      %v1111 = vadd.f32 %v1087, %v1107
      %v1112 = vadd.f32 %v1088, %v1106
      %v1113 = vadd.f32 %v1089, %v1105
      %v1114 = vadd.f32 %v1090, %v1104
      %v1115 = vadd.f32 %v1091, %v1103
      %v1116 = vadd.f32 %v1092, %v1102
      %v1117 = vadd.f32 %v1093, %v1109
      %v1118 = vld [vmem:[%s9] sm:$0xff]
      %v1119 = vld [vmem:[%s9 + $0x8] sm:$0xff]
      %v1120 = vadd.f32 %v1110, %v1118
      %v1121 = vadd.f32 %v1111, %v1119
      %v1122 = vadd.f32 %v1112, %v1118
      %v1123 = vadd.f32 %v1113, %v1119
      %v1124 = vadd.f32 %v1114, %v1118
      %v1125 = vadd.f32 %v1115, %v1119
      %v1126 = vadd.f32 %v1116, %v1118
      %v1127 = vadd.f32 %v1117, %v1119
      %v1128 = vmax.f32 %v1120, %v1121
      %v1129 = vrot.slane %v1128, 4
      %v1130 = vmax.f32 %v1128, %v1129
      %v1131 = vrot.slane %v1130, 2
      %v1132 = vmax.f32 %v1130, %v1131
      %v1133 = vrot.slane %v1132, 1
      %v1134 = vmax.f32 %v1132, %v1133
      %v1135 = vmax.f32 %v1122, %v1123
      %v1136 = vrot.slane %v1135, 4
      %v1137 = vmax.f32 %v1135, %v1136
      %v1138 = vrot.slane %v1137, 2
      %v1139 = vmax.f32 %v1137, %v1138
      %v1140 = vrot.slane %v1139, 1
      %v1141 = vmax.f32 %v1139, %v1140
      %v1142 = vmax.f32 %v1124, %v1125
      %v1143 = vrot.slane %v1142, 4
      %v1144 = vmax.f32 %v1142, %v1143
      %v1145 = vrot.slane %v1144, 2
      %v1146 = vmax.f32 %v1144, %v1145
      %v1147 = vrot.slane %v1146, 1
      %v1148 = vmax.f32 %v1146, %v1147
      %v1149 = vmax.f32 %v1126, %v1127
      %v1150 = vrot.slane %v1149, 4
      %v1151 = vmax.f32 %v1149, %v1150
      %v1152 = vrot.slane %v1151, 2
      %v1153 = vmax.f32 %v1151, %v1152
      %v1154 = vrot.slane %v1153, 1
      %v1155 = vmax.f32 %v1153, %v1154
      %v1156 = vld [vmem:[%s7] sm:$0x1]
      %v1158 = vlaneseq
      %v1159 = vshrl.u32 %v1158, 7
      %v1160 = vsub.s32 0, %v1159
      %v1161 = vrot.slane %v1156, %v1160
      %v1163 = vadd.f32 %v1134, %v1161
      %v1164 = vadd.f32 %v1141, %v1161
      %v1165 = vadd.f32 %v1148, %v1161
      %v1166 = vadd.f32 %v1155, %v1161
      %v1167 = vmax.f32 %v1163, 0.0
      %v1168 = vmax.f32 %v1164, 0.0
      %v1169 = vmax.f32 %v1165, 0.0
      %v1170 = vmax.f32 %v1166, 0.0
      %v1171 = vld [vmem:[%s8] sm:$0x1]
      %v1173 = vlaneseq
      %v1174 = vshrl.u32 %v1173, 7
      %v1175 = vsub.s32 0, %v1174
      %v1176 = vrot.slane %v1171, %v1175
      %v1178 = vmul.f32 %v1167, %v1176
      %v1179 = vmul.f32 %v1168, %v1176
      %v1180 = vmul.f32 %v1169, %v1176
      %v1181 = vmul.f32 %v1170, %v1176
      %v1186 = vrot.slane %v1179, 7
      %v1187 = vsel %vm795, %v1186, %v1178
      %v1188 = vrot.slane %v1180, 6
      %v1189 = vsel %vm798, %v1188, %v1187
      %v1190 = vrot.slane %v1181, 5
      %v1191 = vsel %vm801, %v1190, %v1189
      %v1193 = vsel %vm804, %v1191, 0.0
      %1194 = vadd.xlane.f32.xlu0 %v1193
      %v1195 = vpop.xlane.xlu0 %1194
      %v1196 = vadd.f32 %v807, %v1195
      %v1197 = vld [vmem:[#allocation2] sm:$0x1]
      %v1199 = vlaneseq
      %v1200 = vshrl.u32 %v1199, 7
      %v1201 = vsub.s32 0, %v1200
      %v1202 = vrot.slane %v1197, %v1201
      %v1204 = vadd.f32 %v1196, %v1202
      %v1205 = vxor.u32 %v1204, 2147483648
      %v1206 = vmul.f32 %v1205, 1.442695
      %v1207 = vpow.pop %v1206
      %v1208 = vadd.f32 %v1207, 1.0
      %v1209 = vrcp.pop %v1208
      %v1210 = vmul.f32 1.0, %v1209
      %vm1211 = vcmask 3072
      %1212 = vst.msk [vmem:[%s410] sm:$0xf] %vm1211, %v1210
      %p1213 = scmp.lt.s32.totalorder %s24, 1
      %s1214 = scalar_select %p1213, %s24, 1
      %s1215 = smul.addr %s1214, 4
      %s1216 = scalar_lea.vmem %s11, %s1215
      // Predicated region
      $region65: #{tpu_custom_call.1} parent=63 // pred_check
        %p1217 = pneg %p283
      $region66: #{tpu_custom_call.1} parent=63 // pred_check_branch
        %1219 = sbr.rel (%p1217) target = $region68
      $region67: #{tpu_custom_call.1} parent=63 // pred_region
        _
      $region68: #{tpu_custom_call.1} parent=63 // pred_fallthru
        _
    $region64: #{tpu_custom_call.1} parent=5 // pred_fallthru
      _
    %p1220 = scmp.le.s32.totalorder 2, %s19
    // Predicated region
    $region69: #{tpu_custom_call.1} parent=5 // pred_check
      %p1221 = pneg %p1220
    $region70: #{tpu_custom_call.1} parent=5 // pred_check_branch
      %1223 = sbr.rel (%p1221) target = $region72
    $region71: #{tpu_custom_call.1} parent=5 // pred_region
      %s1224 = ssub.s32 %s19, 2
      // Predicated region
      $region73: #{tpu_custom_call.1} parent=71 // pred_check
        %p1225 = pneg %p289
      $region74: #{tpu_custom_call.1} parent=71 // pred_check_branch
        %1227 = sbr.rel (%p1225) target = $region76
      $region75: #{tpu_custom_call.1} parent=71 // pred_region
        %p1228 = scmp.lt.s32.totalorder %s25, 1
        %s1229 = scalar_select %p1228, %s25, 1
        %s1230 = smul.addr %s1229, 4
        %s1231 = scalar_lea.vmem %s11, %s1230
      $region76: #{tpu_custom_call.1} parent=71 // pred_fallthru
        _
    $region72: #{tpu_custom_call.1} parent=5 // pred_fallthru
      _
  $region6: #{tpu_custom_call.1} parent=0 // loop_footer
    %s23 = sadd.s32 1, %s19
  $region7: #{tpu_custom_call.1} parent=0 // loop_footer_branch
    %18 = sbr.rel target = $region3
  $region8: #{tpu_custom_call.1} parent=0 // loop_exit
    _

</llo_original>
